<compile_context>
chip_gen: v7x
topology: tpu7x:2x2x1
jax: 0.10.0
libtpu: 0.0.40
codegen_flags: <defaults>
</compile_context>

<pallas_src>
import functools
import math

import jax
import jax.numpy as jnp
from jax import lax
from jax.experimental import pallas as pl
from jax.experimental.pallas import tpu as pltpu


def _round_up(x, m):
    return (x + m - 1) // m * m


def _pick_tile_n(vpad, max_tile_n=512):
    """Largest multiple-of-128 divisor of vpad that is <= max_tile_n."""
    n128 = vpad // 128
    best = 1
    for d in range(1, n128 + 1):
        if n128 % d == 0 and 128 * d <= max_tile_n:
            best = d
    return 128 * best


def _fused_forward_kernel(*refs, B, Sq, Skv, D, scale,
                          use_tokens, use_attn, mask_kind, mxu_dtype):
    """Fused forward; grid is (num_vocab_tiles,) over the padded output axis.

    Ref order (static flags decide which are present):
      [tok (BS,) i32 SMEM, emb (V,D) HBM]  or  [x_in (BS,D) VMEM]
      [enc (B*Skv,D), [mask (B,Sq,Skv)], wq,bq, wk,bk, wv,bv]   (if attention)
      wout_tile (D,TN), bout_tile (1,TN), out_tile (BS,TN)
      x_scratch (BS,D) f32, [gather DMA sems (BS,)]
    """
    it = iter(refs)
    if use_tokens:
        tok_ref = next(it)
        emb_ref = next(it)
    else:
        x_in_ref = next(it)
    if use_attn:
        enc_ref = next(it)
        mask_ref = next(it) if mask_kind != "none" else None
        wq_ref = next(it); bq_ref = next(it)
        wk_ref = next(it); bk_ref = next(it)
        wv_ref = next(it); bv_ref = next(it)
    wout_ref = next(it)
    bout_ref = next(it)
    o_ref = next(it)
    x_sc = next(it)
    gsem = next(it) if use_tokens else None

    BS = B * Sq
    mm = (((1,), (0,)), ((), ()))    # plain 2D matmul
    qkT = (((1,), (1,)), ((), ()))   # q k^T contracting last dims (no XLU transpose)

    # ---- build x (embedding gather / input copy + optional attention) once --
    @pl.when(pl.program_id(0) == 0)
    def _build_x():
        if use_tokens:
            # Real gather: per-row HBM->VMEM DMA, token ids read from SMEM.
            copies = []
            for i in range(BS):
                cp = pltpu.make_async_copy(
                    emb_ref.at[pl.ds(tok_ref[i], 1), :],
                    x_sc.at[pl.ds(i, 1), :],
                    gsem.at[i])
                cp.start()
                copies.append(cp)
            for cp in copies:
                cp.wait()
        else:
            x_sc[...] = x_in_ref[...].astype(jnp.float32)

        if use_attn:
            x0 = x_sc[...]                              # f32
            xm = x0.astype(mxu_dtype)
            enc = enc_ref[...].astype(mxu_dtype)
            q = lax.dot_general(xm, wq_ref[...], mm,
                                preferred_element_type=jnp.float32) + bq_ref[...]
            k = lax.dot_general(enc, wk_ref[...], mm,
                                preferred_element_type=jnp.float32) + bk_ref[...]
            v = lax.dot_general(enc, wv_ref[...], mm,
                                preferred_element_type=jnp.float32) + bv_ref[...]
            qm = q.astype(mxu_dtype)
            km = k.astype(mxu_dtype)
            vm = v.astype(mxu_dtype)
            keep = mask_ref[...] != 0 if mask_kind == "bool" else None
            # B is small & static: unrolled loop, results written straight into
            # the scratch slices (no concatenate / relayout copies).
            for b in range(B):
                qb = qm[b * Sq:(b + 1) * Sq]
                kb = km[b * Skv:(b + 1) * Skv]
                vb = vm[b * Skv:(b + 1) * Skv]
                s = lax.dot_general(qb, kb, qkT,
                                    preferred_element_type=jnp.float32) * scale
                if mask_kind == "bool":
                    # NOTE: fully-masked rows give a uniform softmax here
                    # (PyTorch SDPA would return NaN for such rows).
                    s = jnp.where(keep[b], s, jnp.float32(-1e30))
                elif mask_kind == "additive":
                    s = s + mask_ref[b]
                s_max = jnp.max(s, axis=-1, keepdims=True)
                p = jnp.exp(s - s_max)
                denom = jnp.sum(p, axis=-1, keepdims=True)
                p = p * pl.reciprocal(denom, approx=True)   # EUP slot, ~free
                attn_b = lax.dot_general(p.astype(mxu_dtype), vb, mm,
                                         preferred_element_type=jnp.float32)
                x_sc[b * Sq:(b + 1) * Sq, :] = x0[b * Sq:(b + 1) * Sq] + attn_b

    # ---- output projection for this vocab tile (lane-dense stores) ----------
    xw = x_sc[...].astype(mxu_dtype)
    o_ref[...] = lax.dot_general(xw, wout_ref[...], mm,
                                 preferred_element_type=jnp.float32) + bout_ref[...]


class DummyModelPallas:
    """JAX/Pallas port of the torchtune DummyModel; the whole forward is one
    pallas_call with a grid over the (padded, 128-lane-dense) vocab axis.

    Weights for matmuls are stored in `mxu_dtype` (bf16 default: fast MXU path
    and half the weight HBM traffic); accumulation and softmax stats are f32.
    The embedding table stays f32 and is gathered exactly via per-row DMA.
    """

    def __init__(self, dim, vocab_size, key, mxu_dtype=jnp.bfloat16, max_tile_n=512):
        self.dim = dim
        self.vocab_size = vocab_size
        # Prefer vocab_size % 128 == 0 at real dims so the final slice is a no-op.
        self.vocab_pad = _round_up(vocab_size, 128)
        self.tile_n = _pick_tile_n(self.vocab_pad, max_tile_n)
        self.mxu_dtype = mxu_dtype
        self.cache_enabled = False

        ks = jax.random.split(key, 9)
        s = 0.02
        emb = jax.random.normal(ks[0], (vocab_size, dim), jnp.float32) * s
        wq = jax.random.normal(ks[1], (dim, dim), jnp.float32) * s
        bq = jax.random.normal(ks[2], (dim,), jnp.float32) * s
        wk = jax.random.normal(ks[3], (dim, dim), jnp.float32) * s
        bk = jax.random.normal(ks[4], (dim,), jnp.float32) * s
        wv = jax.random.normal(ks[5], (dim, dim), jnp.float32) * s
        bv = jax.random.normal(ks[6], (dim,), jnp.float32) * s
        wout = jax.random.normal(ks[7], (dim, vocab_size), jnp.float32) * s
        bout = jax.random.normal(ks[8], (vocab_size,), jnp.float32) * s

        self.tok_embeddings = emb                       # f32, gathered exactly
        self.wq = wq.astype(mxu_dtype)                  # matmul weights in MXU dtype
        self.wk = wk.astype(mxu_dtype)
        self.wv = wv.astype(mxu_dtype)
        self.bq2d = bq.reshape(1, dim)
        self.bk2d = bk.reshape(1, dim)
        self.bv2d = bv.reshape(1, dim)
        wout_pad = jnp.zeros((dim, self.vocab_pad), jnp.float32).at[:, :vocab_size].set(wout)
        self.wout_pad = wout_pad.astype(mxu_dtype)
        self.bout_pad2d = jnp.zeros((1, self.vocab_pad), jnp.float32).at[:, :vocab_size].set(bout)
        # f32 copies only for the pure-JAX reference check in __main__.
        self._ref_params = dict(wq=wq, bq=bq, wk=wk, bk=bk, wv=wv, bv=bv,
                                wout=wout, bout=bout)

    # -- torchtune-style cache API (state flags only, no kernel work) ---------
    def setup_caches(self, batch_size, dtype, *args, **kwargs):
        self.cache_enabled = True

    def caches_are_setup(self):
        return self.cache_enabled

    def reset_caches(self):
        self.cache_enabled = False

    def __call__(self, tokens, *, mask=None, encoder_input=None,
                 encoder_mask=None, input_pos=None, input_embeds=None):
        use_tokens = input_embeds is None
        use_attn = encoder_input is not None
        D = self.dim
        if use_tokens:
            B, S = tokens.shape
        else:
            B, S = input_embeds.shape[:2]
        BS = B * S
        TN = self.tile_n
        n_tiles = self.vocab_pad // TN

        inputs, in_specs = [], []
        num_sp = 0
        if use_tokens:
            num_sp = 1
            inputs.append(tokens.reshape(BS).astype(jnp.int32))      # scalar prefetch -> SMEM
            inputs.append(self.tok_embeddings)                        # stays in HBM
            in_specs.append(pl.BlockSpec(memory_space=pl.ANY))        # gathered by DMA
        else:
            inputs.append(input_embeds.reshape(BS, D).astype(jnp.float32))
            in_specs.append(pl.BlockSpec((BS, D), lambda j, *_: (0, 0)))

        mask_kind = "none"
        Skv = S
        if use_attn:
            Skv = encoder_input.shape[1]
            inputs.append(encoder_input.reshape(B * Skv, D).astype(jnp.float32))
            in_specs.append(pl.BlockSpec((B * Skv, D), lambda j, *_: (0, 0)))
            # Same fallback as the PyTorch module; a (B,Sq,Sq) decoder mask only
            # works here if it broadcasts to (B,Sq,Skv), i.e. Sq == Skv.
            attn_mask = encoder_mask if encoder_mask is not None else mask
            if attn_mask is not None:
                bm = jnp.broadcast_to(attn_mask, (B, S, Skv))
                if attn_mask.dtype == jnp.bool_:
                    mask_kind = "bool"
                    inputs.append(bm.astype(jnp.int8))     # 4x less traffic than int32
                else:
                    mask_kind = "additive"
                    inputs.append(bm.astype(jnp.float32))
                in_specs.append(pl.BlockSpec((B, S, Skv), lambda j, *_: (0, 0, 0)))
            for w, b2 in ((self.wq, self.bq2d), (self.wk, self.bk2d), (self.wv, self.bv2d)):
                inputs += [w, b2]
                in_specs += [pl.BlockSpec((D, D), lambda j, *_: (0, 0)),
                             pl.BlockSpec((1, D), lambda j, *_: (0, 0))]

        # Streamed (double-buffered) output-projection tiles.
        inputs += [self.wout_pad, self.bout_pad2d]
        in_specs += [pl.BlockSpec((D, TN), lambda j, *_: (0, j)),
                     pl.BlockSpec((1, TN), lambda j, *_: (0, j))]
        out_spec = pl.BlockSpec((BS, TN), lambda j, *_: (0, j))

        scratch = [pltpu.VMEM((BS, D), jnp.float32)]
        if use_tokens:
            scratch.append(pltpu.SemaphoreType.DMA((BS,)))

        kernel = functools.partial(
            _fused_forward_kernel,
            B=B, Sq=S, Skv=Skv, D=D, scale=1.0 / math.sqrt(D),
            use_tokens=use_tokens, use_attn=use_attn, mask_kind=mask_kind,
            mxu_dtype=self.mxu_dtype,
        )

        w_item = jnp.dtype(self.mxu_dtype).itemsize
        flops = 2 * BS * D * self.vocab_pad
        if use_attn:
            flops += 2 * BS * D * D + 2 * 2 * (B * Skv) * D * D + 4 * B * S * Skv * D
        transcendentals = B * S * Skv if use_attn else 0
        bytes_accessed = int(D * self.vocab_pad * w_item          # wout stream
                             + BS * self.vocab_pad * 4            # logits
                             + BS * D * 4 * 4                     # x / enc / q / kv-ish
                             + (3 * D * D * w_item if use_attn else 0))

        out = pl.pallas_call(
            kernel,
            out_shape=jax.ShapeDtypeStruct((BS, self.vocab_pad), jnp.float32),
            grid_spec=pltpu.PrefetchScalarGridSpec(
                num_scalar_prefetch=num_sp,
                grid=(n_tiles,),
                in_specs=in_specs,
                out_specs=out_spec,
                scratch_shapes=scratch),
            compiler_params=pltpu.CompilerParams(
                # x scratch carries state across the vocab axis -> sequential.
                dimension_semantics=("arbitrary",),
                vmem_limit_bytes=32 * 1024 * 1024),
            cost_estimate=pl.CostEstimate(flops=flops,
                                          transcendentals=transcendentals,
                                          bytes_accessed=bytes_accessed),
        )(*inputs)

        # No-op when vocab_size % 128 == 0 (recommended at real dims).
        return out[:, :self.vocab_size].reshape(B, S, self.vocab_size)


# --------------------------- pure-JAX reference ------------------------------
def _reference_forward(model, tokens, *, mask=None, encoder_input=None,
                       encoder_mask=None, input_embeds=None):
    p = model._ref_params
    x = (jnp.take(model.tok_embeddings, tokens, axis=0)
         if input_embeds is None else input_embeds).astype(jnp.float32)
    if encoder_input is not None:
        q = x @ p["wq"] + p["bq"]
        k = encoder_input @ p["wk"] + p["bk"]
        v = encoder_input @ p["wv"] + p["bv"]
        s = jnp.einsum("bqd,bkd->bqk", q, k) / math.sqrt(model.dim)
        attn_mask = encoder_mask if encoder_mask is not None else mask
        if attn_mask is not None:
            if attn_mask.dtype == jnp.bool_:
                s = jnp.where(attn_mask, s, -1e30)
            else:
                s = s + attn_mask
        pr = jax.nn.softmax(s, axis=-1)
        x = x + jnp.einsum("bqk,bkd->bqd", pr, v)
    return x @ p["wout"] + p["bout"]


if __name__ == "__main__":
    dim, vocab_size = 32, 64
    batch, seq, enc_seq = 2, 8, 8

    key = jax.random.PRNGKey(0)
    k_model, k_tok, k_enc, k_mask, k_emb, k_model2, k_tok2 = jax.random.split(key, 7)
    model = DummyModelPallas(dim, vocab_size, k_model)

    tokens = jax.random.randint(k_tok, (batch, seq), 0, vocab_size, dtype=jnp.int32)
    encoder_input = jax.random.normal(k_enc, (batch, enc_seq, dim), jnp.float32)
    encoder_mask = jax.random.bernoulli(k_mask, 0.9, (batch, seq, enc_seq))
    encoder_mask = encoder_mask.at[:, :, 0].set(True)   # no all-masked rows

    # Fused path: DMA-gather embedding + q/k/v + attention + residual + output proj.
    out = jax.block_until_ready(
        model(tokens, encoder_input=encoder_input, encoder_mask=encoder_mask))
    assert out.shape == (batch, seq, vocab_size), out.shape
    ref = _reference_forward(model, tokens, encoder_input=encoder_input,
                             encoder_mask=encoder_mask)
    assert jnp.allclose(out, ref, rtol=2e-2, atol=2e-3), \
        float(jnp.max(jnp.abs(out - ref)))

    # Text-only path (no encoder): embedding gather + output projection only.
    out2 = jax.block_until_ready(model(tokens))
    assert out2.shape == (batch, seq, vocab_size), out2.shape
    ref2 = _reference_forward(model, tokens)
    assert jnp.allclose(out2, ref2, rtol=2e-2, atol=2e-3)

    # input_embeds path (skips the in-kernel gather).
    embeds = jax.random.normal(k_emb, (batch, seq, dim), jnp.float32) * 0.02
    out3 = jax.block_until_ready(
        model(tokens, encoder_input=encoder_input, encoder_mask=encoder_mask,
              input_embeds=embeds))
    assert out3.shape == (batch, seq, vocab_size), out3.shape
    ref3 = _reference_forward(model, tokens, encoder_input=encoder_input,
                              encoder_mask=encoder_mask, input_embeds=embeds)
    assert jnp.allclose(out3, ref3, rtol=2e-2, atol=2e-3)

    # Multi-tile vocab (grid = 2 wout tiles of 128 lanes): exercises the
    # scratch-carrying output-projection pipeline (grid step j > 0 path).
    model2 = DummyModelPallas(dim, 256, k_model2, max_tile_n=128)
    tokens2 = jax.random.randint(k_tok2, (batch, seq), 0, 256, dtype=jnp.int32)
    out4 = jax.block_until_ready(
        model2(tokens2, encoder_input=encoder_input, encoder_mask=encoder_mask))
    assert out4.shape == (batch, seq, 256), out4.shape
    ref4 = _reference_forward(model2, tokens2, encoder_input=encoder_input,
                              encoder_mask=encoder_mask)
    assert jnp.allclose(out4, ref4, rtol=2e-2, atol=2e-3), \
        float(jnp.max(jnp.abs(out4 - ref4)))

    print("KERNEL_OK")
</pallas_src>

<mosaic_0001>
module attributes {stable_mosaic.version = 11 : i64} {
  func.func @_fused_forward_kernel(%arg0: i32, %arg1: memref<16xi32, #tpu.memory_space<smem>>, %arg2: memref<64x32xf32, #tpu.memory_space<any>>, %arg3: memref<16x32xf32, #tpu.memory_space<vmem>>, %arg4: memref<2x8x8xi8, #tpu.memory_space<vmem>>, %arg5: memref<32x32xbf16, #tpu.memory_space<vmem>>, %arg6: memref<1x32xf32, #tpu.memory_space<vmem>>, %arg7: memref<32x32xbf16, #tpu.memory_space<vmem>>, %arg8: memref<1x32xf32, #tpu.memory_space<vmem>>, %arg9: memref<32x32xbf16, #tpu.memory_space<vmem>>, %arg10: memref<1x32xf32, #tpu.memory_space<vmem>>, %arg11: memref<32x128xbf16, #tpu.memory_space<vmem>>, %arg12: memref<1x128xf32, #tpu.memory_space<vmem>>, %arg13: memref<16x128xf32, #tpu.memory_space<vmem>>, %arg14: memref<16x32xf32, #tpu.memory_space<vmem>>, %arg15: memref<16x!tpu.dma_semaphore, #tpu.memory_space<semaphore_mem>>) attributes {dimension_semantics = [#tpu.dimension_semantics<arbitrary>], iteration_bounds = array<i64: 1>, scalar_prefetch = 1 : i64, scratch_operands = 2 : i64, tpu.core_type = #tpu.core_type<tc>, window_params = [{}, {pipeline_mode = #tpu.pipeline_mode<synchronous>, transform_indices = @transform_1, window_bounds = array<i64: 16, 32>}, {pipeline_mode = #tpu.pipeline_mode<synchronous>, transform_indices = @transform_2, window_bounds = array<i64: 2, 8, 8>}, {pipeline_mode = #tpu.pipeline_mode<synchronous>, transform_indices = @transform_3, window_bounds = array<i64: 32, 32>}, {pipeline_mode = #tpu.pipeline_mode<synchronous>, transform_indices = @transform_4, window_bounds = array<i64: 1, 32>}, {pipeline_mode = #tpu.pipeline_mode<synchronous>, transform_indices = @transform_5, window_bounds = array<i64: 32, 32>}, {pipeline_mode = #tpu.pipeline_mode<synchronous>, transform_indices = @transform_6, window_bounds = array<i64: 1, 32>}, {pipeline_mode = #tpu.pipeline_mode<synchronous>, transform_indices = @transform_7, window_bounds = array<i64: 32, 32>}, {pipeline_mode = #tpu.pipeline_mode<synchronous>, transform_indices = @transform_8, window_bounds = array<i64: 1, 32>}, {transform_indices = @transform_9, window_bounds = array<i64: 32, 128>}, {transform_indices = @transform_10, window_bounds = array<i64: 1, 128>}, {transform_indices = @transform_11, window_bounds = array<i64: 16, 128>}]} {
    %c0_i32 = arith.constant 0 : i32
    %0 = arith.cmpi eq, %arg0, %c0_i32 : i32
    %1 = arith.extui %0 : i1 to i32
    %c0_i32_0 = arith.constant 0 : i32
    %2 = arith.cmpi ne, %1, %c0_i32_0 : i32
    scf.if %2 {
      %c0_8 = arith.constant 0 : index
      %11 = memref.load %arg1[%c0_8] : memref<16xi32, #tpu.memory_space<smem>>
      %c0_i32_9 = arith.constant 0 : i32
      %c0_i32_10 = arith.constant 0 : i32
      %12 = tpu.memref_slice %arg2[%11, %c0_i32_10] : memref<64x32xf32, #tpu.memory_space<any>> -> memref<1x32xf32, #tpu.memory_space<any>>
      %c0_i32_11 = arith.constant 0 : i32
      %c0_i32_12 = arith.constant 0 : i32
      %13 = tpu.memref_slice %arg14[%c0_i32_11, %c0_i32_12] : memref<16x32xf32, #tpu.memory_space<vmem>> -> memref<1x32xf32, #tpu.memory_space<vmem>>
      %14 = tpu.memref_slice %arg15[%c0_i32_9] : memref<16x!tpu.dma_semaphore, #tpu.memory_space<semaphore_mem>> -> memref<1x!tpu.dma_semaphore, #tpu.memory_space<semaphore_mem>>
      %15 = tpu.memref_squeeze %14 : memref<1x!tpu.dma_semaphore, #tpu.memory_space<semaphore_mem>> -> memref<!tpu.dma_semaphore, #tpu.memory_space<semaphore_mem>>
      tpu.enqueue_dma source(%12 : memref<1x32xf32, #tpu.memory_space<any>>) target(%13 : memref<1x32xf32, #tpu.memory_space<vmem>>) target_semaphore(%15 : memref<!tpu.dma_semaphore, #tpu.memory_space<semaphore_mem>>)
      %c1 = arith.constant 1 : index
      %16 = memref.load %arg1[%c1] : memref<16xi32, #tpu.memory_space<smem>>
      %c1_i32 = arith.constant 1 : i32
      %c0_i32_13 = arith.constant 0 : i32
      %17 = tpu.memref_slice %arg2[%16, %c0_i32_13] : memref<64x32xf32, #tpu.memory_space<any>> -> memref<1x32xf32, #tpu.memory_space<any>>
      %c1_i32_14 = arith.constant 1 : i32
      %c0_i32_15 = arith.constant 0 : i32
      %18 = tpu.memref_slice %arg14[%c1_i32_14, %c0_i32_15] : memref<16x32xf32, #tpu.memory_space<vmem>> -> memref<1x32xf32, #tpu.memory_space<vmem>>
      %19 = tpu.memref_slice %arg15[%c1_i32] : memref<16x!tpu.dma_semaphore, #tpu.memory_space<semaphore_mem>> -> memref<1x!tpu.dma_semaphore, #tpu.memory_space<semaphore_mem>>
      %20 = tpu.memref_squeeze %19 : memref<1x!tpu.dma_semaphore, #tpu.memory_space<semaphore_mem>> -> memref<!tpu.dma_semaphore, #tpu.memory_space<semaphore_mem>>
      tpu.enqueue_dma source(%17 : memref<1x32xf32, #tpu.memory_space<any>>) target(%18 : memref<1x32xf32, #tpu.memory_space<vmem>>) target_semaphore(%20 : memref<!tpu.dma_semaphore, #tpu.memory_space<semaphore_mem>>)
      %c2 = arith.constant 2 : index
      %21 = memref.load %arg1[%c2] : memref<16xi32, #tpu.memory_space<smem>>
      %c2_i32 = arith.constant 2 : i32
      %c0_i32_16 = arith.constant 0 : i32
      %22 = tpu.memref_slice %arg2[%21, %c0_i32_16] : memref<64x32xf32, #tpu.memory_space<any>> -> memref<1x32xf32, #tpu.memory_space<any>>
      %c2_i32_17 = arith.constant 2 : i32
      %c0_i32_18 = arith.constant 0 : i32
      %23 = tpu.memref_slice %arg14[%c2_i32_17, %c0_i32_18] : memref<16x32xf32, #tpu.memory_space<vmem>> -> memref<1x32xf32, #tpu.memory_space<vmem>>
      %24 = tpu.memref_slice %arg15[%c2_i32] : memref<16x!tpu.dma_semaphore, #tpu.memory_space<semaphore_mem>> -> memref<1x!tpu.dma_semaphore, #tpu.memory_space<semaphore_mem>>
      %25 = tpu.memref_squeeze %24 : memref<1x!tpu.dma_semaphore, #tpu.memory_space<semaphore_mem>> -> memref<!tpu.dma_semaphore, #tpu.memory_space<semaphore_mem>>
      tpu.enqueue_dma source(%22 : memref<1x32xf32, #tpu.memory_space<any>>) target(%23 : memref<1x32xf32, #tpu.memory_space<vmem>>) target_semaphore(%25 : memref<!tpu.dma_semaphore, #tpu.memory_space<semaphore_mem>>)
      %c3 = arith.constant 3 : index
      %26 = memref.load %arg1[%c3] : memref<16xi32, #tpu.memory_space<smem>>
      %c3_i32 = arith.constant 3 : i32
      %c0_i32_19 = arith.constant 0 : i32
      %27 = tpu.memref_slice %arg2[%26, %c0_i32_19] : memref<64x32xf32, #tpu.memory_space<any>> -> memref<1x32xf32, #tpu.memory_space<any>>
      %c3_i32_20 = arith.constant 3 : i32
      %c0_i32_21 = arith.constant 0 : i32
      %28 = tpu.memref_slice %arg14[%c3_i32_20, %c0_i32_21] : memref<16x32xf32, #tpu.memory_space<vmem>> -> memref<1x32xf32, #tpu.memory_space<vmem>>
      %29 = tpu.memref_slice %arg15[%c3_i32] : memref<16x!tpu.dma_semaphore, #tpu.memory_space<semaphore_mem>> -> memref<1x!tpu.dma_semaphore, #tpu.memory_space<semaphore_mem>>
      %30 = tpu.memref_squeeze %29 : memref<1x!tpu.dma_semaphore, #tpu.memory_space<semaphore_mem>> -> memref<!tpu.dma_semaphore, #tpu.memory_space<semaphore_mem>>
      tpu.enqueue_dma source(%27 : memref<1x32xf32, #tpu.memory_space<any>>) target(%28 : memref<1x32xf32, #tpu.memory_space<vmem>>) target_semaphore(%30 : memref<!tpu.dma_semaphore, #tpu.memory_space<semaphore_mem>>)
      %c4 = arith.constant 4 : index
      %31 = memref.load %arg1[%c4] : memref<16xi32, #tpu.memory_space<smem>>
      %c4_i32 = arith.constant 4 : i32
      %c0_i32_22 = arith.constant 0 : i32
      %32 = tpu.memref_slice %arg2[%31, %c0_i32_22] : memref<64x32xf32, #tpu.memory_space<any>> -> memref<1x32xf32, #tpu.memory_space<any>>
      %c4_i32_23 = arith.constant 4 : i32
      %c0_i32_24 = arith.constant 0 : i32
      %33 = tpu.memref_slice %arg14[%c4_i32_23, %c0_i32_24] : memref<16x32xf32, #tpu.memory_space<vmem>> -> memref<1x32xf32, #tpu.memory_space<vmem>>
      %34 = tpu.memref_slice %arg15[%c4_i32] : memref<16x!tpu.dma_semaphore, #tpu.memory_space<semaphore_mem>> -> memref<1x!tpu.dma_semaphore, #tpu.memory_space<semaphore_mem>>
      %35 = tpu.memref_squeeze %34 : memref<1x!tpu.dma_semaphore, #tpu.memory_space<semaphore_mem>> -> memref<!tpu.dma_semaphore, #tpu.memory_space<semaphore_mem>>
      tpu.enqueue_dma source(%32 : memref<1x32xf32, #tpu.memory_space<any>>) target(%33 : memref<1x32xf32, #tpu.memory_space<vmem>>) target_semaphore(%35 : memref<!tpu.dma_semaphore, #tpu.memory_space<semaphore_mem>>)
      %c5 = arith.constant 5 : index
      %36 = memref.load %arg1[%c5] : memref<16xi32, #tpu.memory_space<smem>>
      %c5_i32 = arith.constant 5 : i32
      %c0_i32_25 = arith.constant 0 : i32
      %37 = tpu.memref_slice %arg2[%36, %c0_i32_25] : memref<64x32xf32, #tpu.memory_space<any>> -> memref<1x32xf32, #tpu.memory_space<any>>
      %c5_i32_26 = arith.constant 5 : i32
      %c0_i32_27 = arith.constant 0 : i32
      %38 = tpu.memref_slice %arg14[%c5_i32_26, %c0_i32_27] : memref<16x32xf32, #tpu.memory_space<vmem>> -> memref<1x32xf32, #tpu.memory_space<vmem>>
      %39 = tpu.memref_slice %arg15[%c5_i32] : memref<16x!tpu.dma_semaphore, #tpu.memory_space<semaphore_mem>> -> memref<1x!tpu.dma_semaphore, #tpu.memory_space<semaphore_mem>>
      %40 = tpu.memref_squeeze %39 : memref<1x!tpu.dma_semaphore, #tpu.memory_space<semaphore_mem>> -> memref<!tpu.dma_semaphore, #tpu.memory_space<semaphore_mem>>
      tpu.enqueue_dma source(%37 : memref<1x32xf32, #tpu.memory_space<any>>) target(%38 : memref<1x32xf32, #tpu.memory_space<vmem>>) target_semaphore(%40 : memref<!tpu.dma_semaphore, #tpu.memory_space<semaphore_mem>>)
      %c6 = arith.constant 6 : index
      %41 = memref.load %arg1[%c6] : memref<16xi32, #tpu.memory_space<smem>>
      %c6_i32 = arith.constant 6 : i32
      %c0_i32_28 = arith.constant 0 : i32
      %42 = tpu.memref_slice %arg2[%41, %c0_i32_28] : memref<64x32xf32, #tpu.memory_space<any>> -> memref<1x32xf32, #tpu.memory_space<any>>
      %c6_i32_29 = arith.constant 6 : i32
      %c0_i32_30 = arith.constant 0 : i32
      %43 = tpu.memref_slice %arg14[%c6_i32_29, %c0_i32_30] : memref<16x32xf32, #tpu.memory_space<vmem>> -> memref<1x32xf32, #tpu.memory_space<vmem>>
      %44 = tpu.memref_slice %arg15[%c6_i32] : memref<16x!tpu.dma_semaphore, #tpu.memory_space<semaphore_mem>> -> memref<1x!tpu.dma_semaphore, #tpu.memory_space<semaphore_mem>>
      %45 = tpu.memref_squeeze %44 : memref<1x!tpu.dma_semaphore, #tpu.memory_space<semaphore_mem>> -> memref<!tpu.dma_semaphore, #tpu.memory_space<semaphore_mem>>
      tpu.enqueue_dma source(%42 : memref<1x32xf32, #tpu.memory_space<any>>) target(%43 : memref<1x32xf32, #tpu.memory_space<vmem>>) target_semaphore(%45 : memref<!tpu.dma_semaphore, #tpu.memory_space<semaphore_mem>>)
      %c7 = arith.constant 7 : index
      %46 = memref.load %arg1[%c7] : memref<16xi32, #tpu.memory_space<smem>>
      %c7_i32 = arith.constant 7 : i32
      %c0_i32_31 = arith.constant 0 : i32
      %47 = tpu.memref_slice %arg2[%46, %c0_i32_31] : memref<64x32xf32, #tpu.memory_space<any>> -> memref<1x32xf32, #tpu.memory_space<any>>
      %c7_i32_32 = arith.constant 7 : i32
      %c0_i32_33 = arith.constant 0 : i32
      %48 = tpu.memref_slice %arg14[%c7_i32_32, %c0_i32_33] : memref<16x32xf32, #tpu.memory_space<vmem>> -> memref<1x32xf32, #tpu.memory_space<vmem>>
      %49 = tpu.memref_slice %arg15[%c7_i32] : memref<16x!tpu.dma_semaphore, #tpu.memory_space<semaphore_mem>> -> memref<1x!tpu.dma_semaphore, #tpu.memory_space<semaphore_mem>>
      %50 = tpu.memref_squeeze %49 : memref<1x!tpu.dma_semaphore, #tpu.memory_space<semaphore_mem>> -> memref<!tpu.dma_semaphore, #tpu.memory_space<semaphore_mem>>
      tpu.enqueue_dma source(%47 : memref<1x32xf32, #tpu.memory_space<any>>) target(%48 : memref<1x32xf32, #tpu.memory_space<vmem>>) target_semaphore(%50 : memref<!tpu.dma_semaphore, #tpu.memory_space<semaphore_mem>>)
      %c8 = arith.constant 8 : index
      %51 = memref.load %arg1[%c8] : memref<16xi32, #tpu.memory_space<smem>>
      %c8_i32 = arith.constant 8 : i32
      %c0_i32_34 = arith.constant 0 : i32
      %52 = tpu.memref_slice %arg2[%51, %c0_i32_34] : memref<64x32xf32, #tpu.memory_space<any>> -> memref<1x32xf32, #tpu.memory_space<any>>
      %c8_i32_35 = arith.constant 8 : i32
      %c0_i32_36 = arith.constant 0 : i32
      %53 = tpu.memref_slice %arg14[%c8_i32_35, %c0_i32_36] : memref<16x32xf32, #tpu.memory_space<vmem>> -> memref<1x32xf32, #tpu.memory_space<vmem>>
      %54 = tpu.memref_slice %arg15[%c8_i32] : memref<16x!tpu.dma_semaphore, #tpu.memory_space<semaphore_mem>> -> memref<1x!tpu.dma_semaphore, #tpu.memory_space<semaphore_mem>>
      %55 = tpu.memref_squeeze %54 : memref<1x!tpu.dma_semaphore, #tpu.memory_space<semaphore_mem>> -> memref<!tpu.dma_semaphore, #tpu.memory_space<semaphore_mem>>
      tpu.enqueue_dma source(%52 : memref<1x32xf32, #tpu.memory_space<any>>) target(%53 : memref<1x32xf32, #tpu.memory_space<vmem>>) target_semaphore(%55 : memref<!tpu.dma_semaphore, #tpu.memory_space<semaphore_mem>>)
      %c9 = arith.constant 9 : index
      %56 = memref.load %arg1[%c9] : memref<16xi32, #tpu.memory_space<smem>>
      %c9_i32 = arith.constant 9 : i32
      %c0_i32_37 = arith.constant 0 : i32
      %57 = tpu.memref_slice %arg2[%56, %c0_i32_37] : memref<64x32xf32, #tpu.memory_space<any>> -> memref<1x32xf32, #tpu.memory_space<any>>
      %c9_i32_38 = arith.constant 9 : i32
      %c0_i32_39 = arith.constant 0 : i32
      %58 = tpu.memref_slice %arg14[%c9_i32_38, %c0_i32_39] : memref<16x32xf32, #tpu.memory_space<vmem>> -> memref<1x32xf32, #tpu.memory_space<vmem>>
      %59 = tpu.memref_slice %arg15[%c9_i32] : memref<16x!tpu.dma_semaphore, #tpu.memory_space<semaphore_mem>> -> memref<1x!tpu.dma_semaphore, #tpu.memory_space<semaphore_mem>>
      %60 = tpu.memref_squeeze %59 : memref<1x!tpu.dma_semaphore, #tpu.memory_space<semaphore_mem>> -> memref<!tpu.dma_semaphore, #tpu.memory_space<semaphore_mem>>
      tpu.enqueue_dma source(%57 : memref<1x32xf32, #tpu.memory_space<any>>) target(%58 : memref<1x32xf32, #tpu.memory_space<vmem>>) target_semaphore(%60 : memref<!tpu.dma_semaphore, #tpu.memory_space<semaphore_mem>>)
      %c10 = arith.constant 10 : index
      %61 = memref.load %arg1[%c10] : memref<16xi32, #tpu.memory_space<smem>>
      %c10_i32 = arith.constant 10 : i32
      %c0_i32_40 = arith.constant 0 : i32
      %62 = tpu.memref_slice %arg2[%61, %c0_i32_40] : memref<64x32xf32, #tpu.memory_space<any>> -> memref<1x32xf32, #tpu.memory_space<any>>
      %c10_i32_41 = arith.constant 10 : i32
      %c0_i32_42 = arith.constant 0 : i32
      %63 = tpu.memref_slice %arg14[%c10_i32_41, %c0_i32_42] : memref<16x32xf32, #tpu.memory_space<vmem>> -> memref<1x32xf32, #tpu.memory_space<vmem>>
      %64 = tpu.memref_slice %arg15[%c10_i32] : memref<16x!tpu.dma_semaphore, #tpu.memory_space<semaphore_mem>> -> memref<1x!tpu.dma_semaphore, #tpu.memory_space<semaphore_mem>>
      %65 = tpu.memref_squeeze %64 : memref<1x!tpu.dma_semaphore, #tpu.memory_space<semaphore_mem>> -> memref<!tpu.dma_semaphore, #tpu.memory_space<semaphore_mem>>
      tpu.enqueue_dma source(%62 : memref<1x32xf32, #tpu.memory_space<any>>) target(%63 : memref<1x32xf32, #tpu.memory_space<vmem>>) target_semaphore(%65 : memref<!tpu.dma_semaphore, #tpu.memory_space<semaphore_mem>>)
      %c11 = arith.constant 11 : index
      %66 = memref.load %arg1[%c11] : memref<16xi32, #tpu.memory_space<smem>>
      %c11_i32 = arith.constant 11 : i32
      %c0_i32_43 = arith.constant 0 : i32
      %67 = tpu.memref_slice %arg2[%66, %c0_i32_43] : memref<64x32xf32, #tpu.memory_space<any>> -> memref<1x32xf32, #tpu.memory_space<any>>
      %c11_i32_44 = arith.constant 11 : i32
      %c0_i32_45 = arith.constant 0 : i32
      %68 = tpu.memref_slice %arg14[%c11_i32_44, %c0_i32_45] : memref<16x32xf32, #tpu.memory_space<vmem>> -> memref<1x32xf32, #tpu.memory_space<vmem>>
      %69 = tpu.memref_slice %arg15[%c11_i32] : memref<16x!tpu.dma_semaphore, #tpu.memory_space<semaphore_mem>> -> memref<1x!tpu.dma_semaphore, #tpu.memory_space<semaphore_mem>>
      %70 = tpu.memref_squeeze %69 : memref<1x!tpu.dma_semaphore, #tpu.memory_space<semaphore_mem>> -> memref<!tpu.dma_semaphore, #tpu.memory_space<semaphore_mem>>
      tpu.enqueue_dma source(%67 : memref<1x32xf32, #tpu.memory_space<any>>) target(%68 : memref<1x32xf32, #tpu.memory_space<vmem>>) target_semaphore(%70 : memref<!tpu.dma_semaphore, #tpu.memory_space<semaphore_mem>>)
      %c12 = arith.constant 12 : index
      %71 = memref.load %arg1[%c12] : memref<16xi32, #tpu.memory_space<smem>>
      %c12_i32 = arith.constant 12 : i32
      %c0_i32_46 = arith.constant 0 : i32
      %72 = tpu.memref_slice %arg2[%71, %c0_i32_46] : memref<64x32xf32, #tpu.memory_space<any>> -> memref<1x32xf32, #tpu.memory_space<any>>
      %c12_i32_47 = arith.constant 12 : i32
      %c0_i32_48 = arith.constant 0 : i32
      %73 = tpu.memref_slice %arg14[%c12_i32_47, %c0_i32_48] : memref<16x32xf32, #tpu.memory_space<vmem>> -> memref<1x32xf32, #tpu.memory_space<vmem>>
      %74 = tpu.memref_slice %arg15[%c12_i32] : memref<16x!tpu.dma_semaphore, #tpu.memory_space<semaphore_mem>> -> memref<1x!tpu.dma_semaphore, #tpu.memory_space<semaphore_mem>>
      %75 = tpu.memref_squeeze %74 : memref<1x!tpu.dma_semaphore, #tpu.memory_space<semaphore_mem>> -> memref<!tpu.dma_semaphore, #tpu.memory_space<semaphore_mem>>
      tpu.enqueue_dma source(%72 : memref<1x32xf32, #tpu.memory_space<any>>) target(%73 : memref<1x32xf32, #tpu.memory_space<vmem>>) target_semaphore(%75 : memref<!tpu.dma_semaphore, #tpu.memory_space<semaphore_mem>>)
      %c13 = arith.constant 13 : index
      %76 = memref.load %arg1[%c13] : memref<16xi32, #tpu.memory_space<smem>>
      %c13_i32 = arith.constant 13 : i32
      %c0_i32_49 = arith.constant 0 : i32
      %77 = tpu.memref_slice %arg2[%76, %c0_i32_49] : memref<64x32xf32, #tpu.memory_space<any>> -> memref<1x32xf32, #tpu.memory_space<any>>
      %c13_i32_50 = arith.constant 13 : i32
      %c0_i32_51 = arith.constant 0 : i32
      %78 = tpu.memref_slice %arg14[%c13_i32_50, %c0_i32_51] : memref<16x32xf32, #tpu.memory_space<vmem>> -> memref<1x32xf32, #tpu.memory_space<vmem>>
      %79 = tpu.memref_slice %arg15[%c13_i32] : memref<16x!tpu.dma_semaphore, #tpu.memory_space<semaphore_mem>> -> memref<1x!tpu.dma_semaphore, #tpu.memory_space<semaphore_mem>>
      %80 = tpu.memref_squeeze %79 : memref<1x!tpu.dma_semaphore, #tpu.memory_space<semaphore_mem>> -> memref<!tpu.dma_semaphore, #tpu.memory_space<semaphore_mem>>
      tpu.enqueue_dma source(%77 : memref<1x32xf32, #tpu.memory_space<any>>) target(%78 : memref<1x32xf32, #tpu.memory_space<vmem>>) target_semaphore(%80 : memref<!tpu.dma_semaphore, #tpu.memory_space<semaphore_mem>>)
      %c14 = arith.constant 14 : index
      %81 = memref.load %arg1[%c14] : memref<16xi32, #tpu.memory_space<smem>>
      %c14_i32 = arith.constant 14 : i32
      %c0_i32_52 = arith.constant 0 : i32
      %82 = tpu.memref_slice %arg2[%81, %c0_i32_52] : memref<64x32xf32, #tpu.memory_space<any>> -> memref<1x32xf32, #tpu.memory_space<any>>
      %c14_i32_53 = arith.constant 14 : i32
      %c0_i32_54 = arith.constant 0 : i32
      %83 = tpu.memref_slice %arg14[%c14_i32_53, %c0_i32_54] : memref<16x32xf32, #tpu.memory_space<vmem>> -> memref<1x32xf32, #tpu.memory_space<vmem>>
      %84 = tpu.memref_slice %arg15[%c14_i32] : memref<16x!tpu.dma_semaphore, #tpu.memory_space<semaphore_mem>> -> memref<1x!tpu.dma_semaphore, #tpu.memory_space<semaphore_mem>>
      %85 = tpu.memref_squeeze %84 : memref<1x!tpu.dma_semaphore, #tpu.memory_space<semaphore_mem>> -> memref<!tpu.dma_semaphore, #tpu.memory_space<semaphore_mem>>
      tpu.enqueue_dma source(%82 : memref<1x32xf32, #tpu.memory_space<any>>) target(%83 : memref<1x32xf32, #tpu.memory_space<vmem>>) target_semaphore(%85 : memref<!tpu.dma_semaphore, #tpu.memory_space<semaphore_mem>>)
      %c15 = arith.constant 15 : index
      %86 = memref.load %arg1[%c15] : memref<16xi32, #tpu.memory_space<smem>>
      %c15_i32 = arith.constant 15 : i32
      %c0_i32_55 = arith.constant 0 : i32
      %87 = tpu.memref_slice %arg2[%86, %c0_i32_55] : memref<64x32xf32, #tpu.memory_space<any>> -> memref<1x32xf32, #tpu.memory_space<any>>
      %c15_i32_56 = arith.constant 15 : i32
      %c0_i32_57 = arith.constant 0 : i32
      %88 = tpu.memref_slice %arg14[%c15_i32_56, %c0_i32_57] : memref<16x32xf32, #tpu.memory_space<vmem>> -> memref<1x32xf32, #tpu.memory_space<vmem>>
      %89 = tpu.memref_slice %arg15[%c15_i32] : memref<16x!tpu.dma_semaphore, #tpu.memory_space<semaphore_mem>> -> memref<1x!tpu.dma_semaphore, #tpu.memory_space<semaphore_mem>>
      %90 = tpu.memref_squeeze %89 : memref<1x!tpu.dma_semaphore, #tpu.memory_space<semaphore_mem>> -> memref<!tpu.dma_semaphore, #tpu.memory_space<semaphore_mem>>
      tpu.enqueue_dma source(%87 : memref<1x32xf32, #tpu.memory_space<any>>) target(%88 : memref<1x32xf32, #tpu.memory_space<vmem>>) target_semaphore(%90 : memref<!tpu.dma_semaphore, #tpu.memory_space<semaphore_mem>>)
      %c0_i32_58 = arith.constant 0 : i32
      %c0_i32_59 = arith.constant 0 : i32
      %91 = tpu.memref_slice %arg2[%11, %c0_i32_59] : memref<64x32xf32, #tpu.memory_space<any>> -> memref<1x32xf32, #tpu.memory_space<any>>
      %c0_i32_60 = arith.constant 0 : i32
      %c0_i32_61 = arith.constant 0 : i32
      %92 = tpu.memref_slice %arg14[%c0_i32_60, %c0_i32_61] : memref<16x32xf32, #tpu.memory_space<vmem>> -> memref<1x32xf32, #tpu.memory_space<vmem>>
      %93 = tpu.memref_slice %arg15[%c0_i32_58] : memref<16x!tpu.dma_semaphore, #tpu.memory_space<semaphore_mem>> -> memref<1x!tpu.dma_semaphore, #tpu.memory_space<semaphore_mem>>
      %94 = tpu.memref_squeeze %93 : memref<1x!tpu.dma_semaphore, #tpu.memory_space<semaphore_mem>> -> memref<!tpu.dma_semaphore, #tpu.memory_space<semaphore_mem>>
      tpu.wait_dma2 semaphore(%94 : memref<!tpu.dma_semaphore, #tpu.memory_space<semaphore_mem>>) src(%91 : memref<1x32xf32, #tpu.memory_space<any>>) dst(%92 : memref<1x32xf32, #tpu.memory_space<vmem>>)
      %c1_i32_62 = arith.constant 1 : i32
      %c0_i32_63 = arith.constant 0 : i32
      %95 = tpu.memref_slice %arg2[%16, %c0_i32_63] : memref<64x32xf32, #tpu.memory_space<any>> -> memref<1x32xf32, #tpu.memory_space<any>>
      %c1_i32_64 = arith.constant 1 : i32
      %c0_i32_65 = arith.constant 0 : i32
      %96 = tpu.memref_slice %arg14[%c1_i32_64, %c0_i32_65] : memref<16x32xf32, #tpu.memory_space<vmem>> -> memref<1x32xf32, #tpu.memory_space<vmem>>
      %97 = tpu.memref_slice %arg15[%c1_i32_62] : memref<16x!tpu.dma_semaphore, #tpu.memory_space<semaphore_mem>> -> memref<1x!tpu.dma_semaphore, #tpu.memory_space<semaphore_mem>>
      %98 = tpu.memref_squeeze %97 : memref<1x!tpu.dma_semaphore, #tpu.memory_space<semaphore_mem>> -> memref<!tpu.dma_semaphore, #tpu.memory_space<semaphore_mem>>
      tpu.wait_dma2 semaphore(%98 : memref<!tpu.dma_semaphore, #tpu.memory_space<semaphore_mem>>) src(%95 : memref<1x32xf32, #tpu.memory_space<any>>) dst(%96 : memref<1x32xf32, #tpu.memory_space<vmem>>)
      %c2_i32_66 = arith.constant 2 : i32
      %c0_i32_67 = arith.constant 0 : i32
      %99 = tpu.memref_slice %arg2[%21, %c0_i32_67] : memref<64x32xf32, #tpu.memory_space<any>> -> memref<1x32xf32, #tpu.memory_space<any>>
      %c2_i32_68 = arith.constant 2 : i32
      %c0_i32_69 = arith.constant 0 : i32
      %100 = tpu.memref_slice %arg14[%c2_i32_68, %c0_i32_69] : memref<16x32xf32, #tpu.memory_space<vmem>> -> memref<1x32xf32, #tpu.memory_space<vmem>>
      %101 = tpu.memref_slice %arg15[%c2_i32_66] : memref<16x!tpu.dma_semaphore, #tpu.memory_space<semaphore_mem>> -> memref<1x!tpu.dma_semaphore, #tpu.memory_space<semaphore_mem>>
      %102 = tpu.memref_squeeze %101 : memref<1x!tpu.dma_semaphore, #tpu.memory_space<semaphore_mem>> -> memref<!tpu.dma_semaphore, #tpu.memory_space<semaphore_mem>>
      tpu.wait_dma2 semaphore(%102 : memref<!tpu.dma_semaphore, #tpu.memory_space<semaphore_mem>>) src(%99 : memref<1x32xf32, #tpu.memory_space<any>>) dst(%100 : memref<1x32xf32, #tpu.memory_space<vmem>>)
      %c3_i32_70 = arith.constant 3 : i32
      %c0_i32_71 = arith.constant 0 : i32
      %103 = tpu.memref_slice %arg2[%26, %c0_i32_71] : memref<64x32xf32, #tpu.memory_space<any>> -> memref<1x32xf32, #tpu.memory_space<any>>
      %c3_i32_72 = arith.constant 3 : i32
      %c0_i32_73 = arith.constant 0 : i32
      %104 = tpu.memref_slice %arg14[%c3_i32_72, %c0_i32_73] : memref<16x32xf32, #tpu.memory_space<vmem>> -> memref<1x32xf32, #tpu.memory_space<vmem>>
      %105 = tpu.memref_slice %arg15[%c3_i32_70] : memref<16x!tpu.dma_semaphore, #tpu.memory_space<semaphore_mem>> -> memref<1x!tpu.dma_semaphore, #tpu.memory_space<semaphore_mem>>
      %106 = tpu.memref_squeeze %105 : memref<1x!tpu.dma_semaphore, #tpu.memory_space<semaphore_mem>> -> memref<!tpu.dma_semaphore, #tpu.memory_space<semaphore_mem>>
      tpu.wait_dma2 semaphore(%106 : memref<!tpu.dma_semaphore, #tpu.memory_space<semaphore_mem>>) src(%103 : memref<1x32xf32, #tpu.memory_space<any>>) dst(%104 : memref<1x32xf32, #tpu.memory_space<vmem>>)
      %c4_i32_74 = arith.constant 4 : i32
      %c0_i32_75 = arith.constant 0 : i32
      %107 = tpu.memref_slice %arg2[%31, %c0_i32_75] : memref<64x32xf32, #tpu.memory_space<any>> -> memref<1x32xf32, #tpu.memory_space<any>>
      %c4_i32_76 = arith.constant 4 : i32
      %c0_i32_77 = arith.constant 0 : i32
      %108 = tpu.memref_slice %arg14[%c4_i32_76, %c0_i32_77] : memref<16x32xf32, #tpu.memory_space<vmem>> -> memref<1x32xf32, #tpu.memory_space<vmem>>
      %109 = tpu.memref_slice %arg15[%c4_i32_74] : memref<16x!tpu.dma_semaphore, #tpu.memory_space<semaphore_mem>> -> memref<1x!tpu.dma_semaphore, #tpu.memory_space<semaphore_mem>>
      %110 = tpu.memref_squeeze %109 : memref<1x!tpu.dma_semaphore, #tpu.memory_space<semaphore_mem>> -> memref<!tpu.dma_semaphore, #tpu.memory_space<semaphore_mem>>
      tpu.wait_dma2 semaphore(%110 : memref<!tpu.dma_semaphore, #tpu.memory_space<semaphore_mem>>) src(%107 : memref<1x32xf32, #tpu.memory_space<any>>) dst(%108 : memref<1x32xf32, #tpu.memory_space<vmem>>)
      %c5_i32_78 = arith.constant 5 : i32
      %c0_i32_79 = arith.constant 0 : i32
      %111 = tpu.memref_slice %arg2[%36, %c0_i32_79] : memref<64x32xf32, #tpu.memory_space<any>> -> memref<1x32xf32, #tpu.memory_space<any>>
      %c5_i32_80 = arith.constant 5 : i32
      %c0_i32_81 = arith.constant 0 : i32
      %112 = tpu.memref_slice %arg14[%c5_i32_80, %c0_i32_81] : memref<16x32xf32, #tpu.memory_space<vmem>> -> memref<1x32xf32, #tpu.memory_space<vmem>>
      %113 = tpu.memref_slice %arg15[%c5_i32_78] : memref<16x!tpu.dma_semaphore, #tpu.memory_space<semaphore_mem>> -> memref<1x!tpu.dma_semaphore, #tpu.memory_space<semaphore_mem>>
      %114 = tpu.memref_squeeze %113 : memref<1x!tpu.dma_semaphore, #tpu.memory_space<semaphore_mem>> -> memref<!tpu.dma_semaphore, #tpu.memory_space<semaphore_mem>>
      tpu.wait_dma2 semaphore(%114 : memref<!tpu.dma_semaphore, #tpu.memory_space<semaphore_mem>>) src(%111 : memref<1x32xf32, #tpu.memory_space<any>>) dst(%112 : memref<1x32xf32, #tpu.memory_space<vmem>>)
      %c6_i32_82 = arith.constant 6 : i32
      %c0_i32_83 = arith.constant 0 : i32
      %115 = tpu.memref_slice %arg2[%41, %c0_i32_83] : memref<64x32xf32, #tpu.memory_space<any>> -> memref<1x32xf32, #tpu.memory_space<any>>
      %c6_i32_84 = arith.constant 6 : i32
      %c0_i32_85 = arith.constant 0 : i32
      %116 = tpu.memref_slice %arg14[%c6_i32_84, %c0_i32_85] : memref<16x32xf32, #tpu.memory_space<vmem>> -> memref<1x32xf32, #tpu.memory_space<vmem>>
      %117 = tpu.memref_slice %arg15[%c6_i32_82] : memref<16x!tpu.dma_semaphore, #tpu.memory_space<semaphore_mem>> -> memref<1x!tpu.dma_semaphore, #tpu.memory_space<semaphore_mem>>
      %118 = tpu.memref_squeeze %117 : memref<1x!tpu.dma_semaphore, #tpu.memory_space<semaphore_mem>> -> memref<!tpu.dma_semaphore, #tpu.memory_space<semaphore_mem>>
      tpu.wait_dma2 semaphore(%118 : memref<!tpu.dma_semaphore, #tpu.memory_space<semaphore_mem>>) src(%115 : memref<1x32xf32, #tpu.memory_space<any>>) dst(%116 : memref<1x32xf32, #tpu.memory_space<vmem>>)
      %c7_i32_86 = arith.constant 7 : i32
      %c0_i32_87 = arith.constant 0 : i32
      %119 = tpu.memref_slice %arg2[%46, %c0_i32_87] : memref<64x32xf32, #tpu.memory_space<any>> -> memref<1x32xf32, #tpu.memory_space<any>>
      %c7_i32_88 = arith.constant 7 : i32
      %c0_i32_89 = arith.constant 0 : i32
      %120 = tpu.memref_slice %arg14[%c7_i32_88, %c0_i32_89] : memref<16x32xf32, #tpu.memory_space<vmem>> -> memref<1x32xf32, #tpu.memory_space<vmem>>
      %121 = tpu.memref_slice %arg15[%c7_i32_86] : memref<16x!tpu.dma_semaphore, #tpu.memory_space<semaphore_mem>> -> memref<1x!tpu.dma_semaphore, #tpu.memory_space<semaphore_mem>>
      %122 = tpu.memref_squeeze %121 : memref<1x!tpu.dma_semaphore, #tpu.memory_space<semaphore_mem>> -> memref<!tpu.dma_semaphore, #tpu.memory_space<semaphore_mem>>
      tpu.wait_dma2 semaphore(%122 : memref<!tpu.dma_semaphore, #tpu.memory_space<semaphore_mem>>) src(%119 : memref<1x32xf32, #tpu.memory_space<any>>) dst(%120 : memref<1x32xf32, #tpu.memory_space<vmem>>)
      %c8_i32_90 = arith.constant 8 : i32
      %c0_i32_91 = arith.constant 0 : i32
      %123 = tpu.memref_slice %arg2[%51, %c0_i32_91] : memref<64x32xf32, #tpu.memory_space<any>> -> memref<1x32xf32, #tpu.memory_space<any>>
      %c8_i32_92 = arith.constant 8 : i32
      %c0_i32_93 = arith.constant 0 : i32
      %124 = tpu.memref_slice %arg14[%c8_i32_92, %c0_i32_93] : memref<16x32xf32, #tpu.memory_space<vmem>> -> memref<1x32xf32, #tpu.memory_space<vmem>>
      %125 = tpu.memref_slice %arg15[%c8_i32_90] : memref<16x!tpu.dma_semaphore, #tpu.memory_space<semaphore_mem>> -> memref<1x!tpu.dma_semaphore, #tpu.memory_space<semaphore_mem>>
      %126 = tpu.memref_squeeze %125 : memref<1x!tpu.dma_semaphore, #tpu.memory_space<semaphore_mem>> -> memref<!tpu.dma_semaphore, #tpu.memory_space<semaphore_mem>>
      tpu.wait_dma2 semaphore(%126 : memref<!tpu.dma_semaphore, #tpu.memory_space<semaphore_mem>>) src(%123 : memref<1x32xf32, #tpu.memory_space<any>>) dst(%124 : memref<1x32xf32, #tpu.memory_space<vmem>>)
      %c9_i32_94 = arith.constant 9 : i32
      %c0_i32_95 = arith.constant 0 : i32
      %127 = tpu.memref_slice %arg2[%56, %c0_i32_95] : memref<64x32xf32, #tpu.memory_space<any>> -> memref<1x32xf32, #tpu.memory_space<any>>
      %c9_i32_96 = arith.constant 9 : i32
      %c0_i32_97 = arith.constant 0 : i32
      %128 = tpu.memref_slice %arg14[%c9_i32_96, %c0_i32_97] : memref<16x32xf32, #tpu.memory_space<vmem>> -> memref<1x32xf32, #tpu.memory_space<vmem>>
      %129 = tpu.memref_slice %arg15[%c9_i32_94] : memref<16x!tpu.dma_semaphore, #tpu.memory_space<semaphore_mem>> -> memref<1x!tpu.dma_semaphore, #tpu.memory_space<semaphore_mem>>
      %130 = tpu.memref_squeeze %129 : memref<1x!tpu.dma_semaphore, #tpu.memory_space<semaphore_mem>> -> memref<!tpu.dma_semaphore, #tpu.memory_space<semaphore_mem>>
      tpu.wait_dma2 semaphore(%130 : memref<!tpu.dma_semaphore, #tpu.memory_space<semaphore_mem>>) src(%127 : memref<1x32xf32, #tpu.memory_space<any>>) dst(%128 : memref<1x32xf32, #tpu.memory_space<vmem>>)
      %c10_i32_98 = arith.constant 10 : i32
      %c0_i32_99 = arith.constant 0 : i32
      %131 = tpu.memref_slice %arg2[%61, %c0_i32_99] : memref<64x32xf32, #tpu.memory_space<any>> -> memref<1x32xf32, #tpu.memory_space<any>>
      %c10_i32_100 = arith.constant 10 : i32
      %c0_i32_101 = arith.constant 0 : i32
      %132 = tpu.memref_slice %arg14[%c10_i32_100, %c0_i32_101] : memref<16x32xf32, #tpu.memory_space<vmem>> -> memref<1x32xf32, #tpu.memory_space<vmem>>
      %133 = tpu.memref_slice %arg15[%c10_i32_98] : memref<16x!tpu.dma_semaphore, #tpu.memory_space<semaphore_mem>> -> memref<1x!tpu.dma_semaphore, #tpu.memory_space<semaphore_mem>>
      %134 = tpu.memref_squeeze %133 : memref<1x!tpu.dma_semaphore, #tpu.memory_space<semaphore_mem>> -> memref<!tpu.dma_semaphore, #tpu.memory_space<semaphore_mem>>
      tpu.wait_dma2 semaphore(%134 : memref<!tpu.dma_semaphore, #tpu.memory_space<semaphore_mem>>) src(%131 : memref<1x32xf32, #tpu.memory_space<any>>) dst(%132 : memref<1x32xf32, #tpu.memory_space<vmem>>)
      %c11_i32_102 = arith.constant 11 : i32
      %c0_i32_103 = arith.constant 0 : i32
      %135 = tpu.memref_slice %arg2[%66, %c0_i32_103] : memref<64x32xf32, #tpu.memory_space<any>> -> memref<1x32xf32, #tpu.memory_space<any>>
      %c11_i32_104 = arith.constant 11 : i32
      %c0_i32_105 = arith.constant 0 : i32
      %136 = tpu.memref_slice %arg14[%c11_i32_104, %c0_i32_105] : memref<16x32xf32, #tpu.memory_space<vmem>> -> memref<1x32xf32, #tpu.memory_space<vmem>>
      %137 = tpu.memref_slice %arg15[%c11_i32_102] : memref<16x!tpu.dma_semaphore, #tpu.memory_space<semaphore_mem>> -> memref<1x!tpu.dma_semaphore, #tpu.memory_space<semaphore_mem>>
      %138 = tpu.memref_squeeze %137 : memref<1x!tpu.dma_semaphore, #tpu.memory_space<semaphore_mem>> -> memref<!tpu.dma_semaphore, #tpu.memory_space<semaphore_mem>>
      tpu.wait_dma2 semaphore(%138 : memref<!tpu.dma_semaphore, #tpu.memory_space<semaphore_mem>>) src(%135 : memref<1x32xf32, #tpu.memory_space<any>>) dst(%136 : memref<1x32xf32, #tpu.memory_space<vmem>>)
      %c12_i32_106 = arith.constant 12 : i32
      %c0_i32_107 = arith.constant 0 : i32
      %139 = tpu.memref_slice %arg2[%71, %c0_i32_107] : memref<64x32xf32, #tpu.memory_space<any>> -> memref<1x32xf32, #tpu.memory_space<any>>
      %c12_i32_108 = arith.constant 12 : i32
      %c0_i32_109 = arith.constant 0 : i32
      %140 = tpu.memref_slice %arg14[%c12_i32_108, %c0_i32_109] : memref<16x32xf32, #tpu.memory_space<vmem>> -> memref<1x32xf32, #tpu.memory_space<vmem>>
      %141 = tpu.memref_slice %arg15[%c12_i32_106] : memref<16x!tpu.dma_semaphore, #tpu.memory_space<semaphore_mem>> -> memref<1x!tpu.dma_semaphore, #tpu.memory_space<semaphore_mem>>
      %142 = tpu.memref_squeeze %141 : memref<1x!tpu.dma_semaphore, #tpu.memory_space<semaphore_mem>> -> memref<!tpu.dma_semaphore, #tpu.memory_space<semaphore_mem>>
      tpu.wait_dma2 semaphore(%142 : memref<!tpu.dma_semaphore, #tpu.memory_space<semaphore_mem>>) src(%139 : memref<1x32xf32, #tpu.memory_space<any>>) dst(%140 : memref<1x32xf32, #tpu.memory_space<vmem>>)
      %c13_i32_110 = arith.constant 13 : i32
      %c0_i32_111 = arith.constant 0 : i32
      %143 = tpu.memref_slice %arg2[%76, %c0_i32_111] : memref<64x32xf32, #tpu.memory_space<any>> -> memref<1x32xf32, #tpu.memory_space<any>>
      %c13_i32_112 = arith.constant 13 : i32
      %c0_i32_113 = arith.constant 0 : i32
      %144 = tpu.memref_slice %arg14[%c13_i32_112, %c0_i32_113] : memref<16x32xf32, #tpu.memory_space<vmem>> -> memref<1x32xf32, #tpu.memory_space<vmem>>
      %145 = tpu.memref_slice %arg15[%c13_i32_110] : memref<16x!tpu.dma_semaphore, #tpu.memory_space<semaphore_mem>> -> memref<1x!tpu.dma_semaphore, #tpu.memory_space<semaphore_mem>>
      %146 = tpu.memref_squeeze %145 : memref<1x!tpu.dma_semaphore, #tpu.memory_space<semaphore_mem>> -> memref<!tpu.dma_semaphore, #tpu.memory_space<semaphore_mem>>
      tpu.wait_dma2 semaphore(%146 : memref<!tpu.dma_semaphore, #tpu.memory_space<semaphore_mem>>) src(%143 : memref<1x32xf32, #tpu.memory_space<any>>) dst(%144 : memref<1x32xf32, #tpu.memory_space<vmem>>)
      %c14_i32_114 = arith.constant 14 : i32
      %c0_i32_115 = arith.constant 0 : i32
      %147 = tpu.memref_slice %arg2[%81, %c0_i32_115] : memref<64x32xf32, #tpu.memory_space<any>> -> memref<1x32xf32, #tpu.memory_space<any>>
      %c14_i32_116 = arith.constant 14 : i32
      %c0_i32_117 = arith.constant 0 : i32
      %148 = tpu.memref_slice %arg14[%c14_i32_116, %c0_i32_117] : memref<16x32xf32, #tpu.memory_space<vmem>> -> memref<1x32xf32, #tpu.memory_space<vmem>>
      %149 = tpu.memref_slice %arg15[%c14_i32_114] : memref<16x!tpu.dma_semaphore, #tpu.memory_space<semaphore_mem>> -> memref<1x!tpu.dma_semaphore, #tpu.memory_space<semaphore_mem>>
      %150 = tpu.memref_squeeze %149 : memref<1x!tpu.dma_semaphore, #tpu.memory_space<semaphore_mem>> -> memref<!tpu.dma_semaphore, #tpu.memory_space<semaphore_mem>>
      tpu.wait_dma2 semaphore(%150 : memref<!tpu.dma_semaphore, #tpu.memory_space<semaphore_mem>>) src(%147 : memref<1x32xf32, #tpu.memory_space<any>>) dst(%148 : memref<1x32xf32, #tpu.memory_space<vmem>>)
      %c15_i32_118 = arith.constant 15 : i32
      %c0_i32_119 = arith.constant 0 : i32
      %151 = tpu.memref_slice %arg2[%86, %c0_i32_119] : memref<64x32xf32, #tpu.memory_space<any>> -> memref<1x32xf32, #tpu.memory_space<any>>
      %c15_i32_120 = arith.constant 15 : i32
      %c0_i32_121 = arith.constant 0 : i32
      %152 = tpu.memref_slice %arg14[%c15_i32_120, %c0_i32_121] : memref<16x32xf32, #tpu.memory_space<vmem>> -> memref<1x32xf32, #tpu.memory_space<vmem>>
      %153 = tpu.memref_slice %arg15[%c15_i32_118] : memref<16x!tpu.dma_semaphore, #tpu.memory_space<semaphore_mem>> -> memref<1x!tpu.dma_semaphore, #tpu.memory_space<semaphore_mem>>
      %154 = tpu.memref_squeeze %153 : memref<1x!tpu.dma_semaphore, #tpu.memory_space<semaphore_mem>> -> memref<!tpu.dma_semaphore, #tpu.memory_space<semaphore_mem>>
      tpu.wait_dma2 semaphore(%154 : memref<!tpu.dma_semaphore, #tpu.memory_space<semaphore_mem>>) src(%151 : memref<1x32xf32, #tpu.memory_space<any>>) dst(%152 : memref<1x32xf32, #tpu.memory_space<vmem>>)
      %c0_122 = arith.constant 0 : index
      %c0_123 = arith.constant 0 : index
      %155 = vector.load %arg14[%c0_122, %c0_123] : memref<16x32xf32, #tpu.memory_space<vmem>>, vector<16x32xf32>
      %156 = arith.truncf %155 : vector<16x32xf32> to vector<16x32xbf16>
      %c0_124 = arith.constant 0 : index
      %c0_125 = arith.constant 0 : index
      %157 = vector.load %arg3[%c0_124, %c0_125] : memref<16x32xf32, #tpu.memory_space<vmem>>, vector<16x32xf32>
      %158 = arith.truncf %157 : vector<16x32xf32> to vector<16x32xbf16>
      %c0_126 = arith.constant 0 : index
      %c0_127 = arith.constant 0 : index
      %159 = vector.load %arg5[%c0_126, %c0_127] : memref<32x32xbf16, #tpu.memory_space<vmem>>, vector<32x32xbf16>
      %cst_128 = arith.constant dense<0.000000e+00> : vector<16x32xf32>
      %160 = tpu.matmul %156, %159, %cst_128 {dimension_numbers = #tpu.dot_dimension_numbers<[1], [0], [0], [1], [0, 0, 1, 1], [], []>} : vector<16x32xbf16>, vector<32x32xbf16>, vector<16x32xf32> -> vector<16x32xf32>
      %c0_129 = arith.constant 0 : index
      %c0_130 = arith.constant 0 : index
      %161 = vector.load %arg6[%c0_129, %c0_130] : memref<1x32xf32, #tpu.memory_space<vmem>>, vector<1x32xf32>
      %162 = vector.broadcast %161 : vector<1x32xf32> to vector<16x32xf32>
      %163 = arith.addf %160, %162 : vector<16x32xf32>
      %c0_131 = arith.constant 0 : index
      %c0_132 = arith.constant 0 : index
      %164 = vector.load %arg7[%c0_131, %c0_132] : memref<32x32xbf16, #tpu.memory_space<vmem>>, vector<32x32xbf16>
      %cst_133 = arith.constant dense<0.000000e+00> : vector<16x32xf32>
      %165 = tpu.matmul %158, %164, %cst_133 {dimension_numbers = #tpu.dot_dimension_numbers<[1], [0], [0], [1], [0, 0, 1, 1], [], []>} : vector<16x32xbf16>, vector<32x32xbf16>, vector<16x32xf32> -> vector<16x32xf32>
      %c0_134 = arith.constant 0 : index
      %c0_135 = arith.constant 0 : index
      %166 = vector.load %arg8[%c0_134, %c0_135] : memref<1x32xf32, #tpu.memory_space<vmem>>, vector<1x32xf32>
      %167 = vector.broadcast %166 : vector<1x32xf32> to vector<16x32xf32>
      %168 = arith.addf %165, %167 : vector<16x32xf32>
      %c0_136 = arith.constant 0 : index
      %c0_137 = arith.constant 0 : index
      %169 = vector.load %arg9[%c0_136, %c0_137] : memref<32x32xbf16, #tpu.memory_space<vmem>>, vector<32x32xbf16>
      %cst_138 = arith.constant dense<0.000000e+00> : vector<16x32xf32>
      %170 = tpu.matmul %158, %169, %cst_138 {dimension_numbers = #tpu.dot_dimension_numbers<[1], [0], [0], [1], [0, 0, 1, 1], [], []>} : vector<16x32xbf16>, vector<32x32xbf16>, vector<16x32xf32> -> vector<16x32xf32>
      %c0_139 = arith.constant 0 : index
      %c0_140 = arith.constant 0 : index
      %171 = vector.load %arg10[%c0_139, %c0_140] : memref<1x32xf32, #tpu.memory_space<vmem>>, vector<1x32xf32>
      %172 = vector.broadcast %171 : vector<1x32xf32> to vector<16x32xf32>
      %173 = arith.addf %170, %172 : vector<16x32xf32>
      %174 = arith.truncf %163 : vector<16x32xf32> to vector<16x32xbf16>
      %175 = arith.truncf %168 : vector<16x32xf32> to vector<16x32xbf16>
      %176 = arith.truncf %173 : vector<16x32xf32> to vector<16x32xbf16>
      %c0_141 = arith.constant 0 : index
      %c0_142 = arith.constant 0 : index
      %c0_143 = arith.constant 0 : index
      %177 = vector.load %arg4[%c0_141, %c0_142, %c0_143] : memref<2x8x8xi8, #tpu.memory_space<vmem>>, vector<2x8x8xi8>
      %c0_i8 = arith.constant 0 : i8
      %178 = vector.broadcast %c0_i8 : i8 to vector<2x8x8xi8>
      %179 = arith.cmpi ne, %177, %178 : vector<2x8x8xi8>
      %180 = vector.extract_strided_slice %174 {offsets = [0, 0], sizes = [8, 32], strides = [1, 1]} : vector<16x32xbf16> to vector<8x32xbf16>
      %181 = vector.extract_strided_slice %175 {offsets = [0, 0], sizes = [8, 32], strides = [1, 1]} : vector<16x32xbf16> to vector<8x32xbf16>
      %182 = vector.extract_strided_slice %176 {offsets = [0, 0], sizes = [8, 32], strides = [1, 1]} : vector<16x32xbf16> to vector<8x32xbf16>
      %cst_144 = arith.constant dense<0.000000e+00> : vector<8x8xf32>
      %183 = tpu.matmul %180, %181, %cst_144 {dimension_numbers = #tpu.dot_dimension_numbers<[1], [1], [0], [0], [0, 0, 1, 0], [], []>} : vector<8x32xbf16>, vector<8x32xbf16>, vector<8x8xf32> -> vector<8x8xf32>
      %cst_145 = arith.constant 0.176776692 : f32
      %184 = vector.broadcast %cst_145 : f32 to vector<8x8xf32>
      %185 = arith.mulf %183, %184 : vector<8x8xf32>
      %186 = vector.extract_strided_slice %179 {offsets = [0, 0, 0], sizes = [1, 8, 8], strides = [1, 1, 1]} : vector<2x8x8xi1> to vector<1x8x8xi1>
      %187 = vector.shape_cast %186 : vector<1x8x8xi1> to vector<8x8xi1>
      %cst_146 = arith.constant -1.000000e+30 : f32
      %188 = vector.broadcast %cst_146 : f32 to vector<8x8xf32>
      %189 = arith.select %187, %185, %188 : vector<8x8xi1>, vector<8x8xf32>
      %cst_147 = arith.constant dense<0xFF800000> : vector<8xf32>
      %190 = vector.multi_reduction <maximumf>, %189, %cst_147 [1] : vector<8x8xf32> to vector<8xf32>
      %191 = vector.shape_cast %190 : vector<8xf32> to vector<8x1xf32>
      %192 = vector.broadcast %191 : vector<8x1xf32> to vector<8x8xf32>
      %193 = arith.subf %189, %192 : vector<8x8xf32>
      %194 = math.exp %193 : vector<8x8xf32>
      %cst_148 = arith.constant dense<0.000000e+00> : vector<8xf32>
      %195 = vector.multi_reduction <add>, %194, %cst_148 [1] : vector<8x8xf32> to vector<8xf32>
      %196 = vector.shape_cast %195 : vector<8xf32> to vector<8x1xf32>
      %197 = tpu.reciprocal %196 {approx = true} : vector<8x1xf32> -> vector<8x1xf32>
      %198 = vector.broadcast %197 : vector<8x1xf32> to vector<8x8xf32>
      %199 = arith.mulf %194, %198 : vector<8x8xf32>
      %200 = arith.truncf %199 : vector<8x8xf32> to vector<8x8xbf16>
      %cst_149 = arith.constant dense<0.000000e+00> : vector<8x32xf32>
      %201 = tpu.matmul %200, %182, %cst_149 {dimension_numbers = #tpu.dot_dimension_numbers<[1], [0], [0], [1], [0, 0, 1, 1], [], []>} : vector<8x8xbf16>, vector<8x32xbf16>, vector<8x32xf32> -> vector<8x32xf32>
      %202 = vector.extract_strided_slice %155 {offsets = [0, 0], sizes = [8, 32], strides = [1, 1]} : vector<16x32xf32> to vector<8x32xf32>
      %203 = arith.addf %202, %201 : vector<8x32xf32>
      %c0_150 = arith.constant 0 : index
      %c0_151 = arith.constant 0 : index
      %204 = vector.load %arg14[%c0_150, %c0_151] : memref<16x32xf32, #tpu.memory_space<vmem>>, vector<8x32xf32>
      tpu.vector_store %arg14[%c0_150, %c0_151], %203 {strides = array<i32>} : memref<16x32xf32, #tpu.memory_space<vmem>>, vector<8x32xf32>,
      %205 = vector.extract_strided_slice %174 {offsets = [8, 0], sizes = [8, 32], strides = [1, 1]} : vector<16x32xbf16> to vector<8x32xbf16>
      %206 = vector.extract_strided_slice %175 {offsets = [8, 0], sizes = [8, 32], strides = [1, 1]} : vector<16x32xbf16> to vector<8x32xbf16>
      %207 = vector.extract_strided_slice %176 {offsets = [8, 0], sizes = [8, 32], strides = [1, 1]} : vector<16x32xbf16> to vector<8x32xbf16>
      %cst_152 = arith.constant dense<0.000000e+00> : vector<8x8xf32>
      %208 = tpu.matmul %205, %206, %cst_152 {dimension_numbers = #tpu.dot_dimension_numbers<[1], [1], [0], [0], [0, 0, 1, 0], [], []>} : vector<8x32xbf16>, vector<8x32xbf16>, vector<8x8xf32> -> vector<8x8xf32>
      %cst_153 = arith.constant 0.176776692 : f32
      %209 = vector.broadcast %cst_153 : f32 to vector<8x8xf32>
      %210 = arith.mulf %208, %209 : vector<8x8xf32>
      %211 = vector.extract_strided_slice %179 {offsets = [1, 0, 0], sizes = [1, 8, 8], strides = [1, 1, 1]} : vector<2x8x8xi1> to vector<1x8x8xi1>
      %212 = vector.shape_cast %211 : vector<1x8x8xi1> to vector<8x8xi1>
      %cst_154 = arith.constant -1.000000e+30 : f32
      %213 = vector.broadcast %cst_154 : f32 to vector<8x8xf32>
      %214 = arith.select %212, %210, %213 : vector<8x8xi1>, vector<8x8xf32>
      %cst_155 = arith.constant dense<0xFF800000> : vector<8xf32>
      %215 = vector.multi_reduction <maximumf>, %214, %cst_155 [1] : vector<8x8xf32> to vector<8xf32>
      %216 = vector.shape_cast %215 : vector<8xf32> to vector<8x1xf32>
      %217 = vector.broadcast %216 : vector<8x1xf32> to vector<8x8xf32>
      %218 = arith.subf %214, %217 : vector<8x8xf32>
      %219 = math.exp %218 : vector<8x8xf32>
      %cst_156 = arith.constant dense<0.000000e+00> : vector<8xf32>
      %220 = vector.multi_reduction <add>, %219, %cst_156 [1] : vector<8x8xf32> to vector<8xf32>
      %221 = vector.shape_cast %220 : vector<8xf32> to vector<8x1xf32>
      %222 = tpu.reciprocal %221 {approx = true} : vector<8x1xf32> -> vector<8x1xf32>
      %223 = vector.broadcast %222 : vector<8x1xf32> to vector<8x8xf32>
      %224 = arith.mulf %219, %223 : vector<8x8xf32>
      %225 = arith.truncf %224 : vector<8x8xf32> to vector<8x8xbf16>
      %cst_157 = arith.constant dense<0.000000e+00> : vector<8x32xf32>
      %226 = tpu.matmul %225, %207, %cst_157 {dimension_numbers = #tpu.dot_dimension_numbers<[1], [0], [0], [1], [0, 0, 1, 1], [], []>} : vector<8x8xbf16>, vector<8x32xbf16>, vector<8x32xf32> -> vector<8x32xf32>
      %227 = vector.extract_strided_slice %155 {offsets = [8, 0], sizes = [8, 32], strides = [1, 1]} : vector<16x32xf32> to vector<8x32xf32>
      %228 = arith.addf %227, %226 : vector<8x32xf32>
      %c8_158 = arith.constant 8 : index
      %c0_159 = arith.constant 0 : index
      %229 = vector.load %arg14[%c8_158, %c0_159] : memref<16x32xf32, #tpu.memory_space<vmem>>, vector<8x32xf32>
      tpu.vector_store %arg14[%c8_158, %c0_159], %228 {strides = array<i32>} : memref<16x32xf32, #tpu.memory_space<vmem>>, vector<8x32xf32>,
    } else {
    }
    %c0 = arith.constant 0 : index
    %c0_1 = arith.constant 0 : index
    %3 = vector.load %arg14[%c0, %c0_1] : memref<16x32xf32, #tpu.memory_space<vmem>>, vector<16x32xf32>
    %4 = arith.truncf %3 : vector<16x32xf32> to vector<16x32xbf16>
    %c0_2 = arith.constant 0 : index
    %c0_3 = arith.constant 0 : index
    %5 = vector.load %arg11[%c0_2, %c0_3] : memref<32x128xbf16, #tpu.memory_space<vmem>>, vector<32x128xbf16>
    %cst = arith.constant dense<0.000000e+00> : vector<16x128xf32>
    %6 = tpu.matmul %4, %5, %cst {dimension_numbers = #tpu.dot_dimension_numbers<[1], [0], [0], [1], [0, 0, 1, 1], [], []>} : vector<16x32xbf16>, vector<32x128xbf16>, vector<16x128xf32> -> vector<16x128xf32>
    %c0_4 = arith.constant 0 : index
    %c0_5 = arith.constant 0 : index
    %7 = vector.load %arg12[%c0_4, %c0_5] : memref<1x128xf32, #tpu.memory_space<vmem>>, vector<1x128xf32>
    %8 = vector.broadcast %7 : vector<1x128xf32> to vector<16x128xf32>
    %9 = arith.addf %6, %8 : vector<16x128xf32>
    %c0_6 = arith.constant 0 : index
    %c0_7 = arith.constant 0 : index
    %10 = vector.load %arg13[%c0_6, %c0_7] : memref<16x128xf32, #tpu.memory_space<vmem>>, vector<16x128xf32>
    tpu.vector_store %arg13[%c0_6, %c0_7], %9 {strides = array<i32>} : memref<16x128xf32, #tpu.memory_space<vmem>>, vector<16x128xf32>,
    return
  }
  func.func @transform_1(%arg0: i32, %arg1: memref<16xi32, #tpu.memory_space<smem>>) -> (i32, i32) {
    %c0_i32 = arith.constant 0 : i32
    %c0_i32_0 = arith.constant 0 : i32
    %c0_i32_1 = arith.constant 0 : i32
    return %c0_i32, %c0_i32_0 : i32, i32
  }
  func.func @transform_2(%arg0: i32, %arg1: memref<16xi32, #tpu.memory_space<smem>>) -> (i32, i32, i32) {
    %c0_i32 = arith.constant 0 : i32
    %c0_i32_0 = arith.constant 0 : i32
    %c0_i32_1 = arith.constant 0 : i32
    %c0_i32_2 = arith.constant 0 : i32
    return %c0_i32, %c0_i32_0, %c0_i32_1 : i32, i32, i32
  }
  func.func @transform_3(%arg0: i32, %arg1: memref<16xi32, #tpu.memory_space<smem>>) -> (i32, i32) {
    %c0_i32 = arith.constant 0 : i32
    %c0_i32_0 = arith.constant 0 : i32
    %c0_i32_1 = arith.constant 0 : i32
    return %c0_i32, %c0_i32_0 : i32, i32
  }
  func.func @transform_4(%arg0: i32, %arg1: memref<16xi32, #tpu.memory_space<smem>>) -> (i32, i32) {
    %c0_i32 = arith.constant 0 : i32
    %c0_i32_0 = arith.constant 0 : i32
    %c0_i32_1 = arith.constant 0 : i32
    return %c0_i32, %c0_i32_0 : i32, i32
  }
  func.func @transform_5(%arg0: i32, %arg1: memref<16xi32, #tpu.memory_space<smem>>) -> (i32, i32) {
    %c0_i32 = arith.constant 0 : i32
    %c0_i32_0 = arith.constant 0 : i32
    %c0_i32_1 = arith.constant 0 : i32
    return %c0_i32, %c0_i32_0 : i32, i32
  }
  func.func @transform_6(%arg0: i32, %arg1: memref<16xi32, #tpu.memory_space<smem>>) -> (i32, i32) {
    %c0_i32 = arith.constant 0 : i32
    %c0_i32_0 = arith.constant 0 : i32
    %c0_i32_1 = arith.constant 0 : i32
    return %c0_i32, %c0_i32_0 : i32, i32
  }
  func.func @transform_7(%arg0: i32, %arg1: memref<16xi32, #tpu.memory_space<smem>>) -> (i32, i32) {
    %c0_i32 = arith.constant 0 : i32
    %c0_i32_0 = arith.constant 0 : i32
    %c0_i32_1 = arith.constant 0 : i32
    return %c0_i32, %c0_i32_0 : i32, i32
  }
  func.func @transform_8(%arg0: i32, %arg1: memref<16xi32, #tpu.memory_space<smem>>) -> (i32, i32) {
    %c0_i32 = arith.constant 0 : i32
    %c0_i32_0 = arith.constant 0 : i32
    %c0_i32_1 = arith.constant 0 : i32
    return %c0_i32, %c0_i32_0 : i32, i32
  }
  func.func @transform_9(%arg0: i32, %arg1: memref<16xi32, #tpu.memory_space<smem>>) -> (i32, i32) {
    %c0_i32 = arith.constant 0 : i32
    %c0_i32_0 = arith.constant 0 : i32
    return %c0_i32, %arg0 : i32, i32
  }
  func.func @transform_10(%arg0: i32, %arg1: memref<16xi32, #tpu.memory_space<smem>>) -> (i32, i32) {
    %c0_i32 = arith.constant 0 : i32
    %c0_i32_0 = arith.constant 0 : i32
    return %c0_i32, %arg0 : i32, i32
  }
  func.func @transform_11(%arg0: i32, %arg1: memref<16xi32, #tpu.memory_space<smem>>) -> (i32, i32) {
    %c0_i32 = arith.constant 0 : i32
    %c0_i32_0 = arith.constant 0 : i32
    return %c0_i32, %arg0 : i32, i32
  }
}

</mosaic_0001>

<llo_original>
// kernel: tpu_custom_call.1
$region0: #{tpu_custom_call.1}
  #allocation0 [shape = 'u32[]', space=smem, size = 0x4, offset = 0x4, fixed_abs, tag = 'smem constant byte address 0x4 - core index']
  #allocation1 [shape = 'u32[144,128]{1,0:T(1,128)}', space=vmem, size = 0x12000, scoped, tag = 'internal scratch']
  #allocation2 [shape = 'f32[16,32]{1,0:T(8,128)}', space=vmem, size = 0x2000, scoped, tag = 'scratch operand']
  #allocation3 [shape = 's32[16]{0}', space=sflag, size = 0x40, scoped, tag = 'scratch operand']
  #allocation4 [shape = 's32[1]{0}', space=sflag, size = 0x4, scoped, tag = 'scoped memory for tpu_custom_call.1']
  #allocation5 [shape = 'u8[512]{0}', space=smem, size = 0x200, scoped, tag = 'prefetched SMEM operand 0']
  #allocation8 [shape = 's32[]', space=sflag, size = 0x4, offset = 0, fixed_abs, tag = 'sflag constant byte address 0x0 - dummy sync flag']
  #allocation9 [shape = 's32[]', space=sflag, size = 0x4, offset = 0, fixed_abs, tag = 'sflag constant byte address 0x0 - dummy sync flag']
  #allocation10 [shape = 's32[]', space=sflag, size = 0x4, offset = 0, fixed_abs, tag = 'sflag constant byte address 0x0 - dummy sync flag']
  #allocation11 [shape = 's32[]', space=sflag, size = 0x4, offset = 0, fixed_abs, tag = 'sflag constant byte address 0x0 - dummy sync flag']
  #allocation12 [shape = 's32[]', space=sflag, size = 0x4, offset = 0, fixed_abs, tag = 'sflag constant byte address 0x0 - dummy sync flag']
  #allocation13 [shape = 's32[]', space=sflag, size = 0x4, offset = 0, fixed_abs, tag = 'sflag constant byte address 0x0 - dummy sync flag']
  #allocation14 [shape = 's32[]', space=sflag, size = 0x4, offset = 0, fixed_abs, tag = 'sflag constant byte address 0x0 - dummy sync flag']
  #allocation15 [shape = 's32[]', space=sflag, size = 0x4, offset = 0, fixed_abs, tag = 'sflag constant byte address 0x0 - dummy sync flag']
  #allocation16 [shape = 's32[]', space=sflag, size = 0x4, offset = 0, fixed_abs, tag = 'sflag constant byte address 0x0 - dummy sync flag']
  #allocation17 [shape = 's32[]', space=sflag, size = 0x4, offset = 0, fixed_abs, tag = 'sflag constant byte address 0x0 - dummy sync flag']
  #allocation18 [shape = 's32[]', space=sflag, size = 0x4, offset = 0, fixed_abs, tag = 'sflag constant byte address 0x0 - dummy sync flag']
  #allocation19 [shape = 's32[]', space=sflag, size = 0x4, offset = 0, fixed_abs, tag = 'sflag constant byte address 0x0 - dummy sync flag']
  #allocation20 [shape = 's32[]', space=sflag, size = 0x4, offset = 0, fixed_abs, tag = 'sflag constant byte address 0x0 - dummy sync flag']
  #allocation21 [shape = 's32[]', space=sflag, size = 0x4, offset = 0, fixed_abs, tag = 'sflag constant byte address 0x0 - dummy sync flag']
  #allocation22 [shape = 's32[]', space=sflag, size = 0x4, offset = 0, fixed_abs, tag = 'sflag constant byte address 0x0 - dummy sync flag']
  #allocation23 [shape = 's32[]', space=sflag, size = 0x4, offset = 0, fixed_abs, tag = 'sflag constant byte address 0x0 - dummy sync flag']
  %s0 = inlined_call_operand.vmem [shape: s32[16], index: 0, kind: input, shape index: {}]
  %s1 = inlined_call_operand.vmem [shape: f32[64,32], index: 1, kind: input, shape index: {}]
  %s2 = inlined_call_operand.vmem [shape: f32[16,32], index: 2, kind: input, shape index: {}]
  %s3 = inlined_call_operand.vmem [shape: s8[2,8,8], index: 3, kind: input, shape index: {}]
  %s4 = inlined_call_operand.vmem [shape: bf16[32,32], index: 4, kind: input, shape index: {}]
  %s5 = inlined_call_operand.vmem [shape: f32[1,32], index: 5, kind: input, shape index: {}]
  %s6 = inlined_call_operand.vmem [shape: bf16[32,32], index: 6, kind: input, shape index: {}]
  %s7 = inlined_call_operand.vmem [shape: f32[1,32], index: 7, kind: input, shape index: {}]
  %s8 = inlined_call_operand.vmem [shape: bf16[32,32], index: 8, kind: input, shape index: {}]
  %s9 = inlined_call_operand.vmem [shape: f32[1,32], index: 9, kind: input, shape index: {}]
  %s10 = inlined_call_operand.vmem [shape: bf16[32,128], index: 10, kind: input, shape index: {}]
  %s11 = inlined_call_operand.vmem [shape: f32[1,128], index: 11, kind: input, shape index: {}]
  %s12 = inlined_call_operand.hbm [shape: f32[16,128], index: 12, kind: output, shape index: {}]
  %s13 = sld [smem:[#allocation0]]
  $region534: #{tpu_custom_call.1} parent=0
    _
  %s15 = ssub.s32 1, %s13
  %s16 = scalar_select 0, %s15, %s13
  %s17 = sshll.u32 %s0, 4
  %s18 = int_to_ptr.vmem [resolvable:$true] %s17
  %20 = dma.vmem_to_smem %s18, 16, [#allocation5], [#allocation4]
  %21 = dma.done [#allocation4], 16
  %22 = sfence
  $region1: #{tpu_custom_call.1} parent=0
    #allocation6 [shape = 'u8[8192]{0}', space=vmem, size = 0x2000, scoped, tag = 'output window, operand 0, single buffered']
    #allocation7 [shape = 's32[1]{0}', space=sflag, size = 0x4, scoped, tag = 'scoped memory for tpu_custom_call.1']
    %23 = vsyncpa [#allocation7], 0
    // Predicated region
    $region2: #{tpu_custom_call.1} parent=1 // pred_check
      _
    $region3: #{tpu_custom_call.1} parent=1 // pred_check_branch
      %25 = sbr.rel (0) target = $region5
    $region4: #{tpu_custom_call.1} parent=1 // pred_region
      _
    $region5: #{tpu_custom_call.1} parent=1 // pred_fallthru
      _
    // Predicated region
    $region6: #{tpu_custom_call.1} parent=1 // pred_check
      _
    $region7: #{tpu_custom_call.1} parent=1 // pred_check_branch
      %27 = sbr.rel (0) target = $region9
    $region8: #{tpu_custom_call.1} parent=1 // pred_region
      _
    $region9: #{tpu_custom_call.1} parent=1 // pred_fallthru
      _
    // Predicated region
    $region10: #{tpu_custom_call.1} parent=1 // pred_check
      _
    $region11: #{tpu_custom_call.1} parent=1 // pred_check_branch
      %29 = sbr.rel (0) target = $region13
    $region12: #{tpu_custom_call.1} parent=1 // pred_region
      _
    $region13: #{tpu_custom_call.1} parent=1 // pred_fallthru
      _
    // Predicated region
    $region14: #{tpu_custom_call.1} parent=1 // pred_check
      _
    $region15: #{tpu_custom_call.1} parent=1 // pred_check_branch
      %31 = sbr.rel (0) target = $region17
    $region16: #{tpu_custom_call.1} parent=1 // pred_region
      _
    $region17: #{tpu_custom_call.1} parent=1 // pred_fallthru
      _
    // Predicated region
    $region18: #{tpu_custom_call.1} parent=1 // pred_check
      _
    $region19: #{tpu_custom_call.1} parent=1 // pred_check_branch
      %33 = sbr.rel (0) target = $region21
    $region20: #{tpu_custom_call.1} parent=1 // pred_region
      _
    $region21: #{tpu_custom_call.1} parent=1 // pred_fallthru
      _
    // Predicated region
    $region22: #{tpu_custom_call.1} parent=1 // pred_check
      _
    $region23: #{tpu_custom_call.1} parent=1 // pred_check_branch
      %35 = sbr.rel (0) target = $region25
    $region24: #{tpu_custom_call.1} parent=1 // pred_region
      _
    $region25: #{tpu_custom_call.1} parent=1 // pred_fallthru
      _
    // Predicated region
    $region26: #{tpu_custom_call.1} parent=1 // pred_check
      _
    $region27: #{tpu_custom_call.1} parent=1 // pred_check_branch
      %37 = sbr.rel (0) target = $region29
    $region28: #{tpu_custom_call.1} parent=1 // pred_region
      _
    $region29: #{tpu_custom_call.1} parent=1 // pred_fallthru
      _
    // Predicated region
    $region30: #{tpu_custom_call.1} parent=1 // pred_check
      _
    $region31: #{tpu_custom_call.1} parent=1 // pred_check_branch
      %39 = sbr.rel (0) target = $region33
    $region32: #{tpu_custom_call.1} parent=1 // pred_region
      _
    $region33: #{tpu_custom_call.1} parent=1 // pred_fallthru
      _
    // Predicated region
    $region34: #{tpu_custom_call.1} parent=1 // pred_check
      _
    $region35: #{tpu_custom_call.1} parent=1 // pred_check_branch
      %41 = sbr.rel (0) target = $region37
    $region36: #{tpu_custom_call.1} parent=1 // pred_region
      _
    $region37: #{tpu_custom_call.1} parent=1 // pred_fallthru
      _
    // Predicated region
    $region38: #{tpu_custom_call.1} parent=1 // pred_check
      _
    $region39: #{tpu_custom_call.1} parent=1 // pred_check_branch
      %43 = sbr.rel (0) target = $region41
    $region40: #{tpu_custom_call.1} parent=1 // pred_region
      _
    $region41: #{tpu_custom_call.1} parent=1 // pred_fallthru
      _
    %p47 = scmp.eq.s32.totalorder 0, 0
    // Predicated region
    $region42: #{tpu_custom_call.1} parent=1 // pred_check
      %p48 = pneg %p47
    $region43: #{tpu_custom_call.1} parent=1 // pred_check_branch
      %50 = sbr.rel (%p48) target = $region45
    $region44: #{tpu_custom_call.1} parent=1 // pred_region
      %s51 = sld [smem:[#allocation5]]
      %s52 = scalar_lea.vmem %s1, %s51
      %p54 = scmp.lt.u32.totalorder 1, 8
      %p55 = pneg %p54
      // Predicated region
      $region46: #{tpu_custom_call.1} parent=44 // pred_check
        _
      $region47: #{tpu_custom_call.1} parent=44 // pred_check_branch
        %57 = sbr.rel (%p54) target = $region49
      $region48: #{tpu_custom_call.1} parent=44 // pred_region
        %s72 = sand.u32 1, 7
        %p73 = scmp.eq.s32.totalorder %s72, 0
        %p74 = pneg %p73
        // Predicated region
        $region61: #{tpu_custom_call.1} parent=48 // pred_check
          _
        $region62: #{tpu_custom_call.1} parent=48 // pred_check_branch
          %76 = sbr.rel (%p73) target = $region64
        $region63: #{tpu_custom_call.1} parent=48 // pred_region
          %s77 = sand.u32 1, 7
          %s78 = ssub.s32 1, %s77
          %s79 = scalar_lea.vmem %s52, %s78
          %s80 = ssub.s32 1, %s77
          %s81 = scalar_lea.vmem [#allocation2], %s80
          %s82 = sshllo.u32 0, %s77
          loop: start=0, step=1, limit=1
          $region65: #{tpu_custom_call.1} parent=63 // loop_pre_header
            _
          $region66: #{tpu_custom_call.1} parent=63 // loop_header
            %s84 = sphi 0, %s88
            %p85 = scmp.ge.s32.totalorder %s84, 1
            %s89 = sphi %s79, %s79
            %s90 = sphi %s81, %s81
          $region67: #{tpu_custom_call.1} parent=63 // loop_header_branch
            %87 = sbr.rel (%p85) target = $region71
          $region68: #{tpu_custom_call.1} parent=63 // loop_body
            %v91 = vld [vmem:[%s89] sm:%s82]
            %92 = vst [vmem:[%s90] sm:%s82] %v91
          $region69: #{tpu_custom_call.1} parent=63 // loop_footer
            %s88 = sadd.s32 1, %s84
          $region70: #{tpu_custom_call.1} parent=63 // loop_footer_branch
            %83 = sbr.rel target = $region66
          $region71: #{tpu_custom_call.1} parent=63 // loop_exit
            _
        $region64: #{tpu_custom_call.1} parent=48 // pred_fallthru
          _
      $region49: #{tpu_custom_call.1} parent=44 // pred_fallthru
        _
      // Predicated region
      $region50: #{tpu_custom_call.1} parent=44 // pred_check
        %p58 = pneg %p54
      $region51: #{tpu_custom_call.1} parent=44 // pred_check_branch
        %60 = sbr.rel (%p58) target = $region53
      $region52: #{tpu_custom_call.1} parent=44 // pred_region
        %s61 = sshllo.u32 0, 1
        loop: start=0, step=1, limit=1
        $region54: #{tpu_custom_call.1} parent=52 // loop_pre_header
          _
        $region55: #{tpu_custom_call.1} parent=52 // loop_header
          %s63 = sphi 0, %s67
          %p64 = scmp.ge.s32.totalorder %s63, 1
          %s68 = sphi %s52, %s52
          %s69 = sphi [#allocation2], [#allocation2]
        $region56: #{tpu_custom_call.1} parent=52 // loop_header_branch
          %66 = sbr.rel (%p64) target = $region60
        $region57: #{tpu_custom_call.1} parent=52 // loop_body
          %v70 = vld [vmem:[%s68] sm:%s61]
          %71 = vst [vmem:[%s69] sm:%s61] %v70
        $region58: #{tpu_custom_call.1} parent=52 // loop_footer
          %s67 = sadd.s32 1, %s63
        $region59: #{tpu_custom_call.1} parent=52 // loop_footer_branch
          %62 = sbr.rel target = $region55
        $region60: #{tpu_custom_call.1} parent=52 // loop_exit
          _
      $region53: #{tpu_custom_call.1} parent=44 // pred_fallthru
        _
      // Predicated region
      $region72: #{tpu_custom_call.1} parent=44 // pred_check
        _
      $region73: #{tpu_custom_call.1} parent=44 // pred_check_branch
        %95 = sbr.rel (0) target = $region75
      $region74: #{tpu_custom_call.1} parent=44 // pred_region
        %96 = vsyncadd [#allocation3], 16
      $region75: #{tpu_custom_call.1} parent=44 // pred_fallthru
        _
      %s97 = sld [smem:[#allocation5 + $0x1]]
      %s98 = scalar_lea.vmem %s1, %s97
      %s99 = scalar_lea.vmem [#allocation2], 1
      %s100 = scalar_lea.sflag [#allocation3], 1
      %p102 = scmp.lt.u32.totalorder 1, 8
      %p103 = pneg %p102
      // Predicated region
      $region76: #{tpu_custom_call.1} parent=44 // pred_check
        _
      $region77: #{tpu_custom_call.1} parent=44 // pred_check_branch
        %105 = sbr.rel (%p102) target = $region79
      $region78: #{tpu_custom_call.1} parent=44 // pred_region
        %s120 = sand.u32 1, 7
        %p121 = scmp.eq.s32.totalorder %s120, 0
        %p122 = pneg %p121
        // Predicated region
        $region91: #{tpu_custom_call.1} parent=78 // pred_check
          _
        $region92: #{tpu_custom_call.1} parent=78 // pred_check_branch
          %124 = sbr.rel (%p121) target = $region94
        $region93: #{tpu_custom_call.1} parent=78 // pred_region
          %s125 = sand.u32 1, 7
          %s126 = ssub.s32 1, %s125
          %s127 = scalar_lea.vmem %s98, %s126
          %s128 = ssub.s32 1, %s125
          %s129 = scalar_lea.vmem %s99, %s128 [#allocation2]
          %s130 = sshllo.u32 0, %s125
          loop: start=0, step=1, limit=1
          $region95: #{tpu_custom_call.1} parent=93 // loop_pre_header
            _
          $region96: #{tpu_custom_call.1} parent=93 // loop_header
            %s132 = sphi 0, %s136
            %p133 = scmp.ge.s32.totalorder %s132, 1
            %s137 = sphi %s127, %s127
            %s138 = sphi %s129, %s129
          $region97: #{tpu_custom_call.1} parent=93 // loop_header_branch
            %135 = sbr.rel (%p133) target = $region101
          $region98: #{tpu_custom_call.1} parent=93 // loop_body
            %v139 = vld [vmem:[%s137] sm:%s130]
            %140 = vst [vmem:[%s138] sm:%s130] %v139
          $region99: #{tpu_custom_call.1} parent=93 // loop_footer
            %s136 = sadd.s32 1, %s132
          $region100: #{tpu_custom_call.1} parent=93 // loop_footer_branch
            %131 = sbr.rel target = $region96
          $region101: #{tpu_custom_call.1} parent=93 // loop_exit
            _
        $region94: #{tpu_custom_call.1} parent=78 // pred_fallthru
          _
      $region79: #{tpu_custom_call.1} parent=44 // pred_fallthru
        _
      // Predicated region
      $region80: #{tpu_custom_call.1} parent=44 // pred_check
        %p106 = pneg %p102
      $region81: #{tpu_custom_call.1} parent=44 // pred_check_branch
        %108 = sbr.rel (%p106) target = $region83
      $region82: #{tpu_custom_call.1} parent=44 // pred_region
        %s109 = sshllo.u32 0, 1
        loop: start=0, step=1, limit=1
        $region84: #{tpu_custom_call.1} parent=82 // loop_pre_header
          _
        $region85: #{tpu_custom_call.1} parent=82 // loop_header
          %s111 = sphi 0, %s115
          %p112 = scmp.ge.s32.totalorder %s111, 1
          %s116 = sphi %s98, %s98
          %s117 = sphi %s99, %s99
        $region86: #{tpu_custom_call.1} parent=82 // loop_header_branch
          %114 = sbr.rel (%p112) target = $region90
        $region87: #{tpu_custom_call.1} parent=82 // loop_body
          %v118 = vld [vmem:[%s116] sm:%s109]
          %119 = vst [vmem:[%s117] sm:%s109] %v118
        $region88: #{tpu_custom_call.1} parent=82 // loop_footer
          %s115 = sadd.s32 1, %s111
        $region89: #{tpu_custom_call.1} parent=82 // loop_footer_branch
          %110 = sbr.rel target = $region85
        $region90: #{tpu_custom_call.1} parent=82 // loop_exit
          _
      $region83: #{tpu_custom_call.1} parent=44 // pred_fallthru
        _
      // Predicated region
      $region102: #{tpu_custom_call.1} parent=44 // pred_check
        _
      $region103: #{tpu_custom_call.1} parent=44 // pred_check_branch
        %143 = sbr.rel (0) target = $region105
      $region104: #{tpu_custom_call.1} parent=44 // pred_region
        %144 = vsyncadd %s100, 16
      $region105: #{tpu_custom_call.1} parent=44 // pred_fallthru
        _
      %s145 = sld [smem:[#allocation5 + $0x2]]
      %s146 = scalar_lea.vmem %s1, %s145
      %s147 = scalar_lea.vmem [#allocation2], 2
      %s148 = scalar_lea.sflag [#allocation3], 2
      %p150 = scmp.lt.u32.totalorder 1, 8
      %p151 = pneg %p150
      // Predicated region
      $region106: #{tpu_custom_call.1} parent=44 // pred_check
        _
      $region107: #{tpu_custom_call.1} parent=44 // pred_check_branch
        %153 = sbr.rel (%p150) target = $region109
      $region108: #{tpu_custom_call.1} parent=44 // pred_region
        %s168 = sand.u32 1, 7
        %p169 = scmp.eq.s32.totalorder %s168, 0
        %p170 = pneg %p169
        // Predicated region
        $region121: #{tpu_custom_call.1} parent=108 // pred_check
          _
        $region122: #{tpu_custom_call.1} parent=108 // pred_check_branch
          %172 = sbr.rel (%p169) target = $region124
        $region123: #{tpu_custom_call.1} parent=108 // pred_region
          %s173 = sand.u32 1, 7
          %s174 = ssub.s32 1, %s173
          %s175 = scalar_lea.vmem %s146, %s174
          %s176 = ssub.s32 1, %s173
          %s177 = scalar_lea.vmem %s147, %s176 [#allocation2]
          %s178 = sshllo.u32 0, %s173
          loop: start=0, step=1, limit=1
          $region125: #{tpu_custom_call.1} parent=123 // loop_pre_header
            _
          $region126: #{tpu_custom_call.1} parent=123 // loop_header
            %s180 = sphi 0, %s184
            %p181 = scmp.ge.s32.totalorder %s180, 1
            %s185 = sphi %s175, %s175
            %s186 = sphi %s177, %s177
          $region127: #{tpu_custom_call.1} parent=123 // loop_header_branch
            %183 = sbr.rel (%p181) target = $region131
          $region128: #{tpu_custom_call.1} parent=123 // loop_body
            %v187 = vld [vmem:[%s185] sm:%s178]
            %188 = vst [vmem:[%s186] sm:%s178] %v187
          $region129: #{tpu_custom_call.1} parent=123 // loop_footer
            %s184 = sadd.s32 1, %s180
          $region130: #{tpu_custom_call.1} parent=123 // loop_footer_branch
            %179 = sbr.rel target = $region126
          $region131: #{tpu_custom_call.1} parent=123 // loop_exit
            _
        $region124: #{tpu_custom_call.1} parent=108 // pred_fallthru
          _
      $region109: #{tpu_custom_call.1} parent=44 // pred_fallthru
        _
      // Predicated region
      $region110: #{tpu_custom_call.1} parent=44 // pred_check
        %p154 = pneg %p150
      $region111: #{tpu_custom_call.1} parent=44 // pred_check_branch
        %156 = sbr.rel (%p154) target = $region113
      $region112: #{tpu_custom_call.1} parent=44 // pred_region
        %s157 = sshllo.u32 0, 1
        loop: start=0, step=1, limit=1
        $region114: #{tpu_custom_call.1} parent=112 // loop_pre_header
          _
        $region115: #{tpu_custom_call.1} parent=112 // loop_header
          %s159 = sphi 0, %s163
          %p160 = scmp.ge.s32.totalorder %s159, 1
          %s164 = sphi %s146, %s146
          %s165 = sphi %s147, %s147
        $region116: #{tpu_custom_call.1} parent=112 // loop_header_branch
          %162 = sbr.rel (%p160) target = $region120
        $region117: #{tpu_custom_call.1} parent=112 // loop_body
          %v166 = vld [vmem:[%s164] sm:%s157]
          %167 = vst [vmem:[%s165] sm:%s157] %v166
        $region118: #{tpu_custom_call.1} parent=112 // loop_footer
          %s163 = sadd.s32 1, %s159
        $region119: #{tpu_custom_call.1} parent=112 // loop_footer_branch
          %158 = sbr.rel target = $region115
        $region120: #{tpu_custom_call.1} parent=112 // loop_exit
          _
      $region113: #{tpu_custom_call.1} parent=44 // pred_fallthru
        _
      // Predicated region
      $region132: #{tpu_custom_call.1} parent=44 // pred_check
        _
      $region133: #{tpu_custom_call.1} parent=44 // pred_check_branch
        %191 = sbr.rel (0) target = $region135
      $region134: #{tpu_custom_call.1} parent=44 // pred_region
        %192 = vsyncadd %s148, 16
      $region135: #{tpu_custom_call.1} parent=44 // pred_fallthru
        _
      %s193 = sld [smem:[#allocation5 + $0x3]]
      %s194 = scalar_lea.vmem %s1, %s193
      %s195 = scalar_lea.vmem [#allocation2], 3
      %s196 = scalar_lea.sflag [#allocation3], 3
      %p198 = scmp.lt.u32.totalorder 1, 8
      %p199 = pneg %p198
      // Predicated region
      $region136: #{tpu_custom_call.1} parent=44 // pred_check
        _
      $region137: #{tpu_custom_call.1} parent=44 // pred_check_branch
        %201 = sbr.rel (%p198) target = $region139
      $region138: #{tpu_custom_call.1} parent=44 // pred_region
        %s216 = sand.u32 1, 7
        %p217 = scmp.eq.s32.totalorder %s216, 0
        %p218 = pneg %p217
        // Predicated region
        $region151: #{tpu_custom_call.1} parent=138 // pred_check
          _
        $region152: #{tpu_custom_call.1} parent=138 // pred_check_branch
          %220 = sbr.rel (%p217) target = $region154
        $region153: #{tpu_custom_call.1} parent=138 // pred_region
          %s221 = sand.u32 1, 7
          %s222 = ssub.s32 1, %s221
          %s223 = scalar_lea.vmem %s194, %s222
          %s224 = ssub.s32 1, %s221
          %s225 = scalar_lea.vmem %s195, %s224 [#allocation2]
          %s226 = sshllo.u32 0, %s221
          loop: start=0, step=1, limit=1
          $region155: #{tpu_custom_call.1} parent=153 // loop_pre_header
            _
          $region156: #{tpu_custom_call.1} parent=153 // loop_header
            %s228 = sphi 0, %s232
            %p229 = scmp.ge.s32.totalorder %s228, 1
            %s233 = sphi %s223, %s223
            %s234 = sphi %s225, %s225
          $region157: #{tpu_custom_call.1} parent=153 // loop_header_branch
            %231 = sbr.rel (%p229) target = $region161
          $region158: #{tpu_custom_call.1} parent=153 // loop_body
            %v235 = vld [vmem:[%s233] sm:%s226]
            %236 = vst [vmem:[%s234] sm:%s226] %v235
          $region159: #{tpu_custom_call.1} parent=153 // loop_footer
            %s232 = sadd.s32 1, %s228
          $region160: #{tpu_custom_call.1} parent=153 // loop_footer_branch
            %227 = sbr.rel target = $region156
          $region161: #{tpu_custom_call.1} parent=153 // loop_exit
            _
        $region154: #{tpu_custom_call.1} parent=138 // pred_fallthru
          _
      $region139: #{tpu_custom_call.1} parent=44 // pred_fallthru
        _
      // Predicated region
      $region140: #{tpu_custom_call.1} parent=44 // pred_check
        %p202 = pneg %p198
      $region141: #{tpu_custom_call.1} parent=44 // pred_check_branch
        %204 = sbr.rel (%p202) target = $region143
      $region142: #{tpu_custom_call.1} parent=44 // pred_region
        %s205 = sshllo.u32 0, 1
        loop: start=0, step=1, limit=1
        $region144: #{tpu_custom_call.1} parent=142 // loop_pre_header
          _
        $region145: #{tpu_custom_call.1} parent=142 // loop_header
          %s207 = sphi 0, %s211
          %p208 = scmp.ge.s32.totalorder %s207, 1
          %s212 = sphi %s194, %s194
          %s213 = sphi %s195, %s195
        $region146: #{tpu_custom_call.1} parent=142 // loop_header_branch
          %210 = sbr.rel (%p208) target = $region150
        $region147: #{tpu_custom_call.1} parent=142 // loop_body
          %v214 = vld [vmem:[%s212] sm:%s205]
          %215 = vst [vmem:[%s213] sm:%s205] %v214
        $region148: #{tpu_custom_call.1} parent=142 // loop_footer
          %s211 = sadd.s32 1, %s207
        $region149: #{tpu_custom_call.1} parent=142 // loop_footer_branch
          %206 = sbr.rel target = $region145
        $region150: #{tpu_custom_call.1} parent=142 // loop_exit
          _
      $region143: #{tpu_custom_call.1} parent=44 // pred_fallthru
        _
      // Predicated region
      $region162: #{tpu_custom_call.1} parent=44 // pred_check
        _
      $region163: #{tpu_custom_call.1} parent=44 // pred_check_branch
        %239 = sbr.rel (0) target = $region165
      $region164: #{tpu_custom_call.1} parent=44 // pred_region
        %240 = vsyncadd %s196, 16
      $region165: #{tpu_custom_call.1} parent=44 // pred_fallthru
        _
      %s241 = sld [smem:[#allocation5 + $0x4]]
      %s242 = scalar_lea.vmem %s1, %s241
      %s243 = scalar_lea.vmem [#allocation2], 4
      %s244 = scalar_lea.sflag [#allocation3], 4
      %p246 = scmp.lt.u32.totalorder 1, 8
      %p247 = pneg %p246
      // Predicated region
      $region166: #{tpu_custom_call.1} parent=44 // pred_check
        _
      $region167: #{tpu_custom_call.1} parent=44 // pred_check_branch
        %249 = sbr.rel (%p246) target = $region169
      $region168: #{tpu_custom_call.1} parent=44 // pred_region
        %s264 = sand.u32 1, 7
        %p265 = scmp.eq.s32.totalorder %s264, 0
        %p266 = pneg %p265
        // Predicated region
        $region181: #{tpu_custom_call.1} parent=168 // pred_check
          _
        $region182: #{tpu_custom_call.1} parent=168 // pred_check_branch
          %268 = sbr.rel (%p265) target = $region184
        $region183: #{tpu_custom_call.1} parent=168 // pred_region
          %s269 = sand.u32 1, 7
          %s270 = ssub.s32 1, %s269
          %s271 = scalar_lea.vmem %s242, %s270
          %s272 = ssub.s32 1, %s269
          %s273 = scalar_lea.vmem %s243, %s272 [#allocation2]
          %s274 = sshllo.u32 0, %s269
          loop: start=0, step=1, limit=1
          $region185: #{tpu_custom_call.1} parent=183 // loop_pre_header
            _
          $region186: #{tpu_custom_call.1} parent=183 // loop_header
            %s276 = sphi 0, %s280
            %p277 = scmp.ge.s32.totalorder %s276, 1
            %s281 = sphi %s271, %s271
            %s282 = sphi %s273, %s273
          $region187: #{tpu_custom_call.1} parent=183 // loop_header_branch
            %279 = sbr.rel (%p277) target = $region191
          $region188: #{tpu_custom_call.1} parent=183 // loop_body
            %v283 = vld [vmem:[%s281] sm:%s274]
            %284 = vst [vmem:[%s282] sm:%s274] %v283
          $region189: #{tpu_custom_call.1} parent=183 // loop_footer
            %s280 = sadd.s32 1, %s276
          $region190: #{tpu_custom_call.1} parent=183 // loop_footer_branch
            %275 = sbr.rel target = $region186
          $region191: #{tpu_custom_call.1} parent=183 // loop_exit
            _
        $region184: #{tpu_custom_call.1} parent=168 // pred_fallthru
          _
      $region169: #{tpu_custom_call.1} parent=44 // pred_fallthru
        _
      // Predicated region
      $region170: #{tpu_custom_call.1} parent=44 // pred_check
        %p250 = pneg %p246
      $region171: #{tpu_custom_call.1} parent=44 // pred_check_branch
        %252 = sbr.rel (%p250) target = $region173
      $region172: #{tpu_custom_call.1} parent=44 // pred_region
        %s253 = sshllo.u32 0, 1
        loop: start=0, step=1, limit=1
        $region174: #{tpu_custom_call.1} parent=172 // loop_pre_header
          _
        $region175: #{tpu_custom_call.1} parent=172 // loop_header
          %s255 = sphi 0, %s259
          %p256 = scmp.ge.s32.totalorder %s255, 1
          %s260 = sphi %s242, %s242
          %s261 = sphi %s243, %s243
        $region176: #{tpu_custom_call.1} parent=172 // loop_header_branch
          %258 = sbr.rel (%p256) target = $region180
        $region177: #{tpu_custom_call.1} parent=172 // loop_body
          %v262 = vld [vmem:[%s260] sm:%s253]
          %263 = vst [vmem:[%s261] sm:%s253] %v262
        $region178: #{tpu_custom_call.1} parent=172 // loop_footer
          %s259 = sadd.s32 1, %s255
        $region179: #{tpu_custom_call.1} parent=172 // loop_footer_branch
          %254 = sbr.rel target = $region175
        $region180: #{tpu_custom_call.1} parent=172 // loop_exit
          _
      $region173: #{tpu_custom_call.1} parent=44 // pred_fallthru
        _
      // Predicated region
      $region192: #{tpu_custom_call.1} parent=44 // pred_check
        _
      $region193: #{tpu_custom_call.1} parent=44 // pred_check_branch
        %287 = sbr.rel (0) target = $region195
      $region194: #{tpu_custom_call.1} parent=44 // pred_region
        %288 = vsyncadd %s244, 16
      $region195: #{tpu_custom_call.1} parent=44 // pred_fallthru
        _
      %s289 = sld [smem:[#allocation5 + $0x5]]
      %s290 = scalar_lea.vmem %s1, %s289
      %s291 = scalar_lea.vmem [#allocation2], 5
      %s292 = scalar_lea.sflag [#allocation3], 5
      %p294 = scmp.lt.u32.totalorder 1, 8
      %p295 = pneg %p294
      // Predicated region
      $region196: #{tpu_custom_call.1} parent=44 // pred_check
        _
      $region197: #{tpu_custom_call.1} parent=44 // pred_check_branch
        %297 = sbr.rel (%p294) target = $region199
      $region198: #{tpu_custom_call.1} parent=44 // pred_region
        %s312 = sand.u32 1, 7
        %p313 = scmp.eq.s32.totalorder %s312, 0
        %p314 = pneg %p313
        // Predicated region
        $region211: #{tpu_custom_call.1} parent=198 // pred_check
          _
        $region212: #{tpu_custom_call.1} parent=198 // pred_check_branch
          %316 = sbr.rel (%p313) target = $region214
        $region213: #{tpu_custom_call.1} parent=198 // pred_region
          %s317 = sand.u32 1, 7
          %s318 = ssub.s32 1, %s317
          %s319 = scalar_lea.vmem %s290, %s318
          %s320 = ssub.s32 1, %s317
          %s321 = scalar_lea.vmem %s291, %s320 [#allocation2]
          %s322 = sshllo.u32 0, %s317
          loop: start=0, step=1, limit=1
          $region215: #{tpu_custom_call.1} parent=213 // loop_pre_header
            _
          $region216: #{tpu_custom_call.1} parent=213 // loop_header
            %s324 = sphi 0, %s328
            %p325 = scmp.ge.s32.totalorder %s324, 1
            %s329 = sphi %s319, %s319
            %s330 = sphi %s321, %s321
          $region217: #{tpu_custom_call.1} parent=213 // loop_header_branch
            %327 = sbr.rel (%p325) target = $region221
          $region218: #{tpu_custom_call.1} parent=213 // loop_body
            %v331 = vld [vmem:[%s329] sm:%s322]
            %332 = vst [vmem:[%s330] sm:%s322] %v331
          $region219: #{tpu_custom_call.1} parent=213 // loop_footer
            %s328 = sadd.s32 1, %s324
          $region220: #{tpu_custom_call.1} parent=213 // loop_footer_branch
            %323 = sbr.rel target = $region216
          $region221: #{tpu_custom_call.1} parent=213 // loop_exit
            _
        $region214: #{tpu_custom_call.1} parent=198 // pred_fallthru
          _
      $region199: #{tpu_custom_call.1} parent=44 // pred_fallthru
        _
      // Predicated region
      $region200: #{tpu_custom_call.1} parent=44 // pred_check
        %p298 = pneg %p294
      $region201: #{tpu_custom_call.1} parent=44 // pred_check_branch
        %300 = sbr.rel (%p298) target = $region203
      $region202: #{tpu_custom_call.1} parent=44 // pred_region
        %s301 = sshllo.u32 0, 1
        loop: start=0, step=1, limit=1
        $region204: #{tpu_custom_call.1} parent=202 // loop_pre_header
          _
        $region205: #{tpu_custom_call.1} parent=202 // loop_header
          %s303 = sphi 0, %s307
          %p304 = scmp.ge.s32.totalorder %s303, 1
          %s308 = sphi %s290, %s290
          %s309 = sphi %s291, %s291
        $region206: #{tpu_custom_call.1} parent=202 // loop_header_branch
          %306 = sbr.rel (%p304) target = $region210
        $region207: #{tpu_custom_call.1} parent=202 // loop_body
          %v310 = vld [vmem:[%s308] sm:%s301]
          %311 = vst [vmem:[%s309] sm:%s301] %v310
        $region208: #{tpu_custom_call.1} parent=202 // loop_footer
          %s307 = sadd.s32 1, %s303
        $region209: #{tpu_custom_call.1} parent=202 // loop_footer_branch
          %302 = sbr.rel target = $region205
        $region210: #{tpu_custom_call.1} parent=202 // loop_exit
          _
      $region203: #{tpu_custom_call.1} parent=44 // pred_fallthru
        _
      // Predicated region
      $region222: #{tpu_custom_call.1} parent=44 // pred_check
        _
      $region223: #{tpu_custom_call.1} parent=44 // pred_check_branch
        %335 = sbr.rel (0) target = $region225
      $region224: #{tpu_custom_call.1} parent=44 // pred_region
        %336 = vsyncadd %s292, 16
      $region225: #{tpu_custom_call.1} parent=44 // pred_fallthru
        _
      %s337 = sld [smem:[#allocation5 + $0x6]]
      %s338 = scalar_lea.vmem %s1, %s337
      %s339 = scalar_lea.vmem [#allocation2], 6
      %s340 = scalar_lea.sflag [#allocation3], 6
      %p342 = scmp.lt.u32.totalorder 1, 8
      %p343 = pneg %p342
      // Predicated region
      $region226: #{tpu_custom_call.1} parent=44 // pred_check
        _
      $region227: #{tpu_custom_call.1} parent=44 // pred_check_branch
        %345 = sbr.rel (%p342) target = $region229
      $region228: #{tpu_custom_call.1} parent=44 // pred_region
        %s360 = sand.u32 1, 7
        %p361 = scmp.eq.s32.totalorder %s360, 0
        %p362 = pneg %p361
        // Predicated region
        $region241: #{tpu_custom_call.1} parent=228 // pred_check
          _
        $region242: #{tpu_custom_call.1} parent=228 // pred_check_branch
          %364 = sbr.rel (%p361) target = $region244
        $region243: #{tpu_custom_call.1} parent=228 // pred_region
          %s365 = sand.u32 1, 7
          %s366 = ssub.s32 1, %s365
          %s367 = scalar_lea.vmem %s338, %s366
          %s368 = ssub.s32 1, %s365
          %s369 = scalar_lea.vmem %s339, %s368 [#allocation2]
          %s370 = sshllo.u32 0, %s365
          loop: start=0, step=1, limit=1
          $region245: #{tpu_custom_call.1} parent=243 // loop_pre_header
            _
          $region246: #{tpu_custom_call.1} parent=243 // loop_header
            %s372 = sphi 0, %s376
            %p373 = scmp.ge.s32.totalorder %s372, 1
            %s377 = sphi %s367, %s367
            %s378 = sphi %s369, %s369
          $region247: #{tpu_custom_call.1} parent=243 // loop_header_branch
            %375 = sbr.rel (%p373) target = $region251
          $region248: #{tpu_custom_call.1} parent=243 // loop_body
            %v379 = vld [vmem:[%s377] sm:%s370]
            %380 = vst [vmem:[%s378] sm:%s370] %v379
          $region249: #{tpu_custom_call.1} parent=243 // loop_footer
            %s376 = sadd.s32 1, %s372
          $region250: #{tpu_custom_call.1} parent=243 // loop_footer_branch
            %371 = sbr.rel target = $region246
          $region251: #{tpu_custom_call.1} parent=243 // loop_exit
            _
        $region244: #{tpu_custom_call.1} parent=228 // pred_fallthru
          _
      $region229: #{tpu_custom_call.1} parent=44 // pred_fallthru
        _
      // Predicated region
      $region230: #{tpu_custom_call.1} parent=44 // pred_check
        %p346 = pneg %p342
      $region231: #{tpu_custom_call.1} parent=44 // pred_check_branch
        %348 = sbr.rel (%p346) target = $region233
      $region232: #{tpu_custom_call.1} parent=44 // pred_region
        %s349 = sshllo.u32 0, 1
        loop: start=0, step=1, limit=1
        $region234: #{tpu_custom_call.1} parent=232 // loop_pre_header
          _
        $region235: #{tpu_custom_call.1} parent=232 // loop_header
          %s351 = sphi 0, %s355
          %p352 = scmp.ge.s32.totalorder %s351, 1
          %s356 = sphi %s338, %s338
          %s357 = sphi %s339, %s339
        $region236: #{tpu_custom_call.1} parent=232 // loop_header_branch
          %354 = sbr.rel (%p352) target = $region240
        $region237: #{tpu_custom_call.1} parent=232 // loop_body
          %v358 = vld [vmem:[%s356] sm:%s349]
          %359 = vst [vmem:[%s357] sm:%s349] %v358
        $region238: #{tpu_custom_call.1} parent=232 // loop_footer
          %s355 = sadd.s32 1, %s351
        $region239: #{tpu_custom_call.1} parent=232 // loop_footer_branch
          %350 = sbr.rel target = $region235
        $region240: #{tpu_custom_call.1} parent=232 // loop_exit
          _
      $region233: #{tpu_custom_call.1} parent=44 // pred_fallthru
        _
      // Predicated region
      $region252: #{tpu_custom_call.1} parent=44 // pred_check
        _
      $region253: #{tpu_custom_call.1} parent=44 // pred_check_branch
        %383 = sbr.rel (0) target = $region255
      $region254: #{tpu_custom_call.1} parent=44 // pred_region
        %384 = vsyncadd %s340, 16
      $region255: #{tpu_custom_call.1} parent=44 // pred_fallthru
        _
      %s385 = sld [smem:[#allocation5 + $0x7]]
      %s386 = scalar_lea.vmem %s1, %s385
      %s387 = scalar_lea.vmem [#allocation2], 7
      %s388 = scalar_lea.sflag [#allocation3], 7
      %p390 = scmp.lt.u32.totalorder 1, 8
      %p391 = pneg %p390
      // Predicated region
      $region256: #{tpu_custom_call.1} parent=44 // pred_check
        _
      $region257: #{tpu_custom_call.1} parent=44 // pred_check_branch
        %393 = sbr.rel (%p390) target = $region259
      $region258: #{tpu_custom_call.1} parent=44 // pred_region
        %s408 = sand.u32 1, 7
        %p409 = scmp.eq.s32.totalorder %s408, 0
        %p410 = pneg %p409
        // Predicated region
        $region271: #{tpu_custom_call.1} parent=258 // pred_check
          _
        $region272: #{tpu_custom_call.1} parent=258 // pred_check_branch
          %412 = sbr.rel (%p409) target = $region274
        $region273: #{tpu_custom_call.1} parent=258 // pred_region
          %s413 = sand.u32 1, 7
          %s414 = ssub.s32 1, %s413
          %s415 = scalar_lea.vmem %s386, %s414
          %s416 = ssub.s32 1, %s413
          %s417 = scalar_lea.vmem %s387, %s416 [#allocation2]
          %s418 = sshllo.u32 0, %s413
          loop: start=0, step=1, limit=1
          $region275: #{tpu_custom_call.1} parent=273 // loop_pre_header
            _
          $region276: #{tpu_custom_call.1} parent=273 // loop_header
            %s420 = sphi 0, %s424
            %p421 = scmp.ge.s32.totalorder %s420, 1
            %s425 = sphi %s415, %s415
            %s426 = sphi %s417, %s417
          $region277: #{tpu_custom_call.1} parent=273 // loop_header_branch
            %423 = sbr.rel (%p421) target = $region281
          $region278: #{tpu_custom_call.1} parent=273 // loop_body
            %v427 = vld [vmem:[%s425] sm:%s418]
            %428 = vst [vmem:[%s426] sm:%s418] %v427
          $region279: #{tpu_custom_call.1} parent=273 // loop_footer
            %s424 = sadd.s32 1, %s420
          $region280: #{tpu_custom_call.1} parent=273 // loop_footer_branch
            %419 = sbr.rel target = $region276
          $region281: #{tpu_custom_call.1} parent=273 // loop_exit
            _
        $region274: #{tpu_custom_call.1} parent=258 // pred_fallthru
          _
      $region259: #{tpu_custom_call.1} parent=44 // pred_fallthru
        _
      // Predicated region
      $region260: #{tpu_custom_call.1} parent=44 // pred_check
        %p394 = pneg %p390
      $region261: #{tpu_custom_call.1} parent=44 // pred_check_branch
        %396 = sbr.rel (%p394) target = $region263
      $region262: #{tpu_custom_call.1} parent=44 // pred_region
        %s397 = sshllo.u32 0, 1
        loop: start=0, step=1, limit=1
        $region264: #{tpu_custom_call.1} parent=262 // loop_pre_header
          _
        $region265: #{tpu_custom_call.1} parent=262 // loop_header
          %s399 = sphi 0, %s403
          %p400 = scmp.ge.s32.totalorder %s399, 1
          %s404 = sphi %s386, %s386
          %s405 = sphi %s387, %s387
        $region266: #{tpu_custom_call.1} parent=262 // loop_header_branch
          %402 = sbr.rel (%p400) target = $region270
        $region267: #{tpu_custom_call.1} parent=262 // loop_body
          %v406 = vld [vmem:[%s404] sm:%s397]
          %407 = vst [vmem:[%s405] sm:%s397] %v406
        $region268: #{tpu_custom_call.1} parent=262 // loop_footer
          %s403 = sadd.s32 1, %s399
        $region269: #{tpu_custom_call.1} parent=262 // loop_footer_branch
          %398 = sbr.rel target = $region265
        $region270: #{tpu_custom_call.1} parent=262 // loop_exit
          _
      $region263: #{tpu_custom_call.1} parent=44 // pred_fallthru
        _
      // Predicated region
      $region282: #{tpu_custom_call.1} parent=44 // pred_check
        _
      $region283: #{tpu_custom_call.1} parent=44 // pred_check_branch
        %431 = sbr.rel (0) target = $region285
      $region284: #{tpu_custom_call.1} parent=44 // pred_region
        %432 = vsyncadd %s388, 16
      $region285: #{tpu_custom_call.1} parent=44 // pred_fallthru
        _
      %s433 = sld [smem:[#allocation5 + $0x8]]
      %s434 = scalar_lea.vmem %s1, %s433
      %s435 = scalar_lea.vmem [#allocation2], 8
      %s436 = scalar_lea.sflag [#allocation3], 8
      %p438 = scmp.lt.u32.totalorder 1, 8
      %p439 = pneg %p438
      // Predicated region
      $region286: #{tpu_custom_call.1} parent=44 // pred_check
        _
      $region287: #{tpu_custom_call.1} parent=44 // pred_check_branch
        %441 = sbr.rel (%p438) target = $region289
      $region288: #{tpu_custom_call.1} parent=44 // pred_region
        %s456 = sand.u32 1, 7
        %p457 = scmp.eq.s32.totalorder %s456, 0
        %p458 = pneg %p457
        // Predicated region
        $region301: #{tpu_custom_call.1} parent=288 // pred_check
          _
        $region302: #{tpu_custom_call.1} parent=288 // pred_check_branch
          %460 = sbr.rel (%p457) target = $region304
        $region303: #{tpu_custom_call.1} parent=288 // pred_region
          %s461 = sand.u32 1, 7
          %s462 = ssub.s32 1, %s461
          %s463 = scalar_lea.vmem %s434, %s462
          %s464 = ssub.s32 1, %s461
          %s465 = scalar_lea.vmem %s435, %s464 [#allocation2]
          %s466 = sshllo.u32 0, %s461
          loop: start=0, step=1, limit=1
          $region305: #{tpu_custom_call.1} parent=303 // loop_pre_header
            _
          $region306: #{tpu_custom_call.1} parent=303 // loop_header
            %s468 = sphi 0, %s472
            %p469 = scmp.ge.s32.totalorder %s468, 1
            %s473 = sphi %s463, %s463
            %s474 = sphi %s465, %s465
          $region307: #{tpu_custom_call.1} parent=303 // loop_header_branch
            %471 = sbr.rel (%p469) target = $region311
          $region308: #{tpu_custom_call.1} parent=303 // loop_body
            %v475 = vld [vmem:[%s473] sm:%s466]
            %476 = vst [vmem:[%s474] sm:%s466] %v475
          $region309: #{tpu_custom_call.1} parent=303 // loop_footer
            %s472 = sadd.s32 1, %s468
          $region310: #{tpu_custom_call.1} parent=303 // loop_footer_branch
            %467 = sbr.rel target = $region306
          $region311: #{tpu_custom_call.1} parent=303 // loop_exit
            _
        $region304: #{tpu_custom_call.1} parent=288 // pred_fallthru
          _
      $region289: #{tpu_custom_call.1} parent=44 // pred_fallthru
        _
      // Predicated region
      $region290: #{tpu_custom_call.1} parent=44 // pred_check
        %p442 = pneg %p438
      $region291: #{tpu_custom_call.1} parent=44 // pred_check_branch
        %444 = sbr.rel (%p442) target = $region293
      $region292: #{tpu_custom_call.1} parent=44 // pred_region
        %s445 = sshllo.u32 0, 1
        loop: start=0, step=1, limit=1
        $region294: #{tpu_custom_call.1} parent=292 // loop_pre_header
          _
        $region295: #{tpu_custom_call.1} parent=292 // loop_header
          %s447 = sphi 0, %s451
          %p448 = scmp.ge.s32.totalorder %s447, 1
          %s452 = sphi %s434, %s434
          %s453 = sphi %s435, %s435
        $region296: #{tpu_custom_call.1} parent=292 // loop_header_branch
          %450 = sbr.rel (%p448) target = $region300
        $region297: #{tpu_custom_call.1} parent=292 // loop_body
          %v454 = vld [vmem:[%s452] sm:%s445]
          %455 = vst [vmem:[%s453] sm:%s445] %v454
        $region298: #{tpu_custom_call.1} parent=292 // loop_footer
          %s451 = sadd.s32 1, %s447
        $region299: #{tpu_custom_call.1} parent=292 // loop_footer_branch
          %446 = sbr.rel target = $region295
        $region300: #{tpu_custom_call.1} parent=292 // loop_exit
          _
      $region293: #{tpu_custom_call.1} parent=44 // pred_fallthru
        _
      // Predicated region
      $region312: #{tpu_custom_call.1} parent=44 // pred_check
        _
      $region313: #{tpu_custom_call.1} parent=44 // pred_check_branch
        %479 = sbr.rel (0) target = $region315
      $region314: #{tpu_custom_call.1} parent=44 // pred_region
        %480 = vsyncadd %s436, 16
      $region315: #{tpu_custom_call.1} parent=44 // pred_fallthru
        _
      %s481 = sld [smem:[#allocation5 + $0x9]]
      %s482 = scalar_lea.vmem %s1, %s481
      %s483 = scalar_lea.vmem [#allocation2], 9
      %s484 = scalar_lea.sflag [#allocation3], 9
      %p486 = scmp.lt.u32.totalorder 1, 8
      %p487 = pneg %p486
      // Predicated region
      $region316: #{tpu_custom_call.1} parent=44 // pred_check
        _
      $region317: #{tpu_custom_call.1} parent=44 // pred_check_branch
        %489 = sbr.rel (%p486) target = $region319
      $region318: #{tpu_custom_call.1} parent=44 // pred_region
        %s504 = sand.u32 1, 7
        %p505 = scmp.eq.s32.totalorder %s504, 0
        %p506 = pneg %p505
        // Predicated region
        $region331: #{tpu_custom_call.1} parent=318 // pred_check
          _
        $region332: #{tpu_custom_call.1} parent=318 // pred_check_branch
          %508 = sbr.rel (%p505) target = $region334
        $region333: #{tpu_custom_call.1} parent=318 // pred_region
          %s509 = sand.u32 1, 7
          %s510 = ssub.s32 1, %s509
          %s511 = scalar_lea.vmem %s482, %s510
          %s512 = ssub.s32 1, %s509
          %s513 = scalar_lea.vmem %s483, %s512 [#allocation2]
          %s514 = sshllo.u32 0, %s509
          loop: start=0, step=1, limit=1
          $region335: #{tpu_custom_call.1} parent=333 // loop_pre_header
            _
          $region336: #{tpu_custom_call.1} parent=333 // loop_header
            %s516 = sphi 0, %s520
            %p517 = scmp.ge.s32.totalorder %s516, 1
            %s521 = sphi %s511, %s511
            %s522 = sphi %s513, %s513
          $region337: #{tpu_custom_call.1} parent=333 // loop_header_branch
            %519 = sbr.rel (%p517) target = $region341
          $region338: #{tpu_custom_call.1} parent=333 // loop_body
            %v523 = vld [vmem:[%s521] sm:%s514]
            %524 = vst [vmem:[%s522] sm:%s514] %v523
          $region339: #{tpu_custom_call.1} parent=333 // loop_footer
            %s520 = sadd.s32 1, %s516
          $region340: #{tpu_custom_call.1} parent=333 // loop_footer_branch
            %515 = sbr.rel target = $region336
          $region341: #{tpu_custom_call.1} parent=333 // loop_exit
            _
        $region334: #{tpu_custom_call.1} parent=318 // pred_fallthru
          _
      $region319: #{tpu_custom_call.1} parent=44 // pred_fallthru
        _
      // Predicated region
      $region320: #{tpu_custom_call.1} parent=44 // pred_check
        %p490 = pneg %p486
      $region321: #{tpu_custom_call.1} parent=44 // pred_check_branch
        %492 = sbr.rel (%p490) target = $region323
      $region322: #{tpu_custom_call.1} parent=44 // pred_region
        %s493 = sshllo.u32 0, 1
        loop: start=0, step=1, limit=1
        $region324: #{tpu_custom_call.1} parent=322 // loop_pre_header
          _
        $region325: #{tpu_custom_call.1} parent=322 // loop_header
          %s495 = sphi 0, %s499
          %p496 = scmp.ge.s32.totalorder %s495, 1
          %s500 = sphi %s482, %s482
          %s501 = sphi %s483, %s483
        $region326: #{tpu_custom_call.1} parent=322 // loop_header_branch
          %498 = sbr.rel (%p496) target = $region330
        $region327: #{tpu_custom_call.1} parent=322 // loop_body
          %v502 = vld [vmem:[%s500] sm:%s493]
          %503 = vst [vmem:[%s501] sm:%s493] %v502
        $region328: #{tpu_custom_call.1} parent=322 // loop_footer
          %s499 = sadd.s32 1, %s495
        $region329: #{tpu_custom_call.1} parent=322 // loop_footer_branch
          %494 = sbr.rel target = $region325
        $region330: #{tpu_custom_call.1} parent=322 // loop_exit
          _
      $region323: #{tpu_custom_call.1} parent=44 // pred_fallthru
        _
      // Predicated region
      $region342: #{tpu_custom_call.1} parent=44 // pred_check
        _
      $region343: #{tpu_custom_call.1} parent=44 // pred_check_branch
        %527 = sbr.rel (0) target = $region345
      $region344: #{tpu_custom_call.1} parent=44 // pred_region
        %528 = vsyncadd %s484, 16
      $region345: #{tpu_custom_call.1} parent=44 // pred_fallthru
        _
      %s529 = sld [smem:[#allocation5 + $0xa]]
      %s530 = scalar_lea.vmem %s1, %s529
      %s531 = scalar_lea.vmem [#allocation2], 10
      %s532 = scalar_lea.sflag [#allocation3], 10
      %p534 = scmp.lt.u32.totalorder 1, 8
      %p535 = pneg %p534
      // Predicated region
      $region346: #{tpu_custom_call.1} parent=44 // pred_check
        _
      $region347: #{tpu_custom_call.1} parent=44 // pred_check_branch
        %537 = sbr.rel (%p534) target = $region349
      $region348: #{tpu_custom_call.1} parent=44 // pred_region
        %s552 = sand.u32 1, 7
        %p553 = scmp.eq.s32.totalorder %s552, 0
        %p554 = pneg %p553
        // Predicated region
        $region361: #{tpu_custom_call.1} parent=348 // pred_check
          _
        $region362: #{tpu_custom_call.1} parent=348 // pred_check_branch
          %556 = sbr.rel (%p553) target = $region364
        $region363: #{tpu_custom_call.1} parent=348 // pred_region
          %s557 = sand.u32 1, 7
          %s558 = ssub.s32 1, %s557
          %s559 = scalar_lea.vmem %s530, %s558
          %s560 = ssub.s32 1, %s557
          %s561 = scalar_lea.vmem %s531, %s560 [#allocation2]
          %s562 = sshllo.u32 0, %s557
          loop: start=0, step=1, limit=1
          $region365: #{tpu_custom_call.1} parent=363 // loop_pre_header
            _
          $region366: #{tpu_custom_call.1} parent=363 // loop_header
            %s564 = sphi 0, %s568
            %p565 = scmp.ge.s32.totalorder %s564, 1
            %s569 = sphi %s559, %s559
            %s570 = sphi %s561, %s561
          $region367: #{tpu_custom_call.1} parent=363 // loop_header_branch
            %567 = sbr.rel (%p565) target = $region371
          $region368: #{tpu_custom_call.1} parent=363 // loop_body
            %v571 = vld [vmem:[%s569] sm:%s562]
            %572 = vst [vmem:[%s570] sm:%s562] %v571
          $region369: #{tpu_custom_call.1} parent=363 // loop_footer
            %s568 = sadd.s32 1, %s564
          $region370: #{tpu_custom_call.1} parent=363 // loop_footer_branch
            %563 = sbr.rel target = $region366
          $region371: #{tpu_custom_call.1} parent=363 // loop_exit
            _
        $region364: #{tpu_custom_call.1} parent=348 // pred_fallthru
          _
      $region349: #{tpu_custom_call.1} parent=44 // pred_fallthru
        _
      // Predicated region
      $region350: #{tpu_custom_call.1} parent=44 // pred_check
        %p538 = pneg %p534
      $region351: #{tpu_custom_call.1} parent=44 // pred_check_branch
        %540 = sbr.rel (%p538) target = $region353
      $region352: #{tpu_custom_call.1} parent=44 // pred_region
        %s541 = sshllo.u32 0, 1
        loop: start=0, step=1, limit=1
        $region354: #{tpu_custom_call.1} parent=352 // loop_pre_header
          _
        $region355: #{tpu_custom_call.1} parent=352 // loop_header
          %s543 = sphi 0, %s547
          %p544 = scmp.ge.s32.totalorder %s543, 1
          %s548 = sphi %s530, %s530
          %s549 = sphi %s531, %s531
        $region356: #{tpu_custom_call.1} parent=352 // loop_header_branch
          %546 = sbr.rel (%p544) target = $region360
        $region357: #{tpu_custom_call.1} parent=352 // loop_body
          %v550 = vld [vmem:[%s548] sm:%s541]
          %551 = vst [vmem:[%s549] sm:%s541] %v550
        $region358: #{tpu_custom_call.1} parent=352 // loop_footer
          %s547 = sadd.s32 1, %s543
        $region359: #{tpu_custom_call.1} parent=352 // loop_footer_branch
          %542 = sbr.rel target = $region355
        $region360: #{tpu_custom_call.1} parent=352 // loop_exit
          _
      $region353: #{tpu_custom_call.1} parent=44 // pred_fallthru
        _
      // Predicated region
      $region372: #{tpu_custom_call.1} parent=44 // pred_check
        _
      $region373: #{tpu_custom_call.1} parent=44 // pred_check_branch
        %575 = sbr.rel (0) target = $region375
      $region374: #{tpu_custom_call.1} parent=44 // pred_region
        %576 = vsyncadd %s532, 16
      $region375: #{tpu_custom_call.1} parent=44 // pred_fallthru
        _
      %s577 = sld [smem:[#allocation5 + $0xb]]
      %s578 = scalar_lea.vmem %s1, %s577
      %s579 = scalar_lea.vmem [#allocation2], 11
      %s580 = scalar_lea.sflag [#allocation3], 11
      %p582 = scmp.lt.u32.totalorder 1, 8
      %p583 = pneg %p582
      // Predicated region
      $region376: #{tpu_custom_call.1} parent=44 // pred_check
        _
      $region377: #{tpu_custom_call.1} parent=44 // pred_check_branch
        %585 = sbr.rel (%p582) target = $region379
      $region378: #{tpu_custom_call.1} parent=44 // pred_region
        %s600 = sand.u32 1, 7
        %p601 = scmp.eq.s32.totalorder %s600, 0
        %p602 = pneg %p601
        // Predicated region
        $region391: #{tpu_custom_call.1} parent=378 // pred_check
          _
        $region392: #{tpu_custom_call.1} parent=378 // pred_check_branch
          %604 = sbr.rel (%p601) target = $region394
        $region393: #{tpu_custom_call.1} parent=378 // pred_region
          %s605 = sand.u32 1, 7
          %s606 = ssub.s32 1, %s605
          %s607 = scalar_lea.vmem %s578, %s606
          %s608 = ssub.s32 1, %s605
          %s609 = scalar_lea.vmem %s579, %s608 [#allocation2]
          %s610 = sshllo.u32 0, %s605
          loop: start=0, step=1, limit=1
          $region395: #{tpu_custom_call.1} parent=393 // loop_pre_header
            _
          $region396: #{tpu_custom_call.1} parent=393 // loop_header
            %s612 = sphi 0, %s616
            %p613 = scmp.ge.s32.totalorder %s612, 1
            %s617 = sphi %s607, %s607
            %s618 = sphi %s609, %s609
          $region397: #{tpu_custom_call.1} parent=393 // loop_header_branch
            %615 = sbr.rel (%p613) target = $region401
          $region398: #{tpu_custom_call.1} parent=393 // loop_body
            %v619 = vld [vmem:[%s617] sm:%s610]
            %620 = vst [vmem:[%s618] sm:%s610] %v619
          $region399: #{tpu_custom_call.1} parent=393 // loop_footer
            %s616 = sadd.s32 1, %s612
          $region400: #{tpu_custom_call.1} parent=393 // loop_footer_branch
            %611 = sbr.rel target = $region396
          $region401: #{tpu_custom_call.1} parent=393 // loop_exit
            _
        $region394: #{tpu_custom_call.1} parent=378 // pred_fallthru
          _
      $region379: #{tpu_custom_call.1} parent=44 // pred_fallthru
        _
      // Predicated region
      $region380: #{tpu_custom_call.1} parent=44 // pred_check
        %p586 = pneg %p582
      $region381: #{tpu_custom_call.1} parent=44 // pred_check_branch
        %588 = sbr.rel (%p586) target = $region383
      $region382: #{tpu_custom_call.1} parent=44 // pred_region
        %s589 = sshllo.u32 0, 1
        loop: start=0, step=1, limit=1
        $region384: #{tpu_custom_call.1} parent=382 // loop_pre_header
          _
        $region385: #{tpu_custom_call.1} parent=382 // loop_header
          %s591 = sphi 0, %s595
          %p592 = scmp.ge.s32.totalorder %s591, 1
          %s596 = sphi %s578, %s578
          %s597 = sphi %s579, %s579
        $region386: #{tpu_custom_call.1} parent=382 // loop_header_branch
          %594 = sbr.rel (%p592) target = $region390
        $region387: #{tpu_custom_call.1} parent=382 // loop_body
          %v598 = vld [vmem:[%s596] sm:%s589]
          %599 = vst [vmem:[%s597] sm:%s589] %v598
        $region388: #{tpu_custom_call.1} parent=382 // loop_footer
          %s595 = sadd.s32 1, %s591
        $region389: #{tpu_custom_call.1} parent=382 // loop_footer_branch
          %590 = sbr.rel target = $region385
        $region390: #{tpu_custom_call.1} parent=382 // loop_exit
          _
      $region383: #{tpu_custom_call.1} parent=44 // pred_fallthru
        _
      // Predicated region
      $region402: #{tpu_custom_call.1} parent=44 // pred_check
        _
      $region403: #{tpu_custom_call.1} parent=44 // pred_check_branch
        %623 = sbr.rel (0) target = $region405
      $region404: #{tpu_custom_call.1} parent=44 // pred_region
        %624 = vsyncadd %s580, 16
      $region405: #{tpu_custom_call.1} parent=44 // pred_fallthru
        _
      %s625 = sld [smem:[#allocation5 + $0xc]]
      %s626 = scalar_lea.vmem %s1, %s625
      %s627 = scalar_lea.vmem [#allocation2], 12
      %s628 = scalar_lea.sflag [#allocation3], 12
      %p630 = scmp.lt.u32.totalorder 1, 8
      %p631 = pneg %p630
      // Predicated region
      $region406: #{tpu_custom_call.1} parent=44 // pred_check
        _
      $region407: #{tpu_custom_call.1} parent=44 // pred_check_branch
        %633 = sbr.rel (%p630) target = $region409
      $region408: #{tpu_custom_call.1} parent=44 // pred_region
        %s648 = sand.u32 1, 7
        %p649 = scmp.eq.s32.totalorder %s648, 0
        %p650 = pneg %p649
        // Predicated region
        $region421: #{tpu_custom_call.1} parent=408 // pred_check
          _
        $region422: #{tpu_custom_call.1} parent=408 // pred_check_branch
          %652 = sbr.rel (%p649) target = $region424
        $region423: #{tpu_custom_call.1} parent=408 // pred_region
          %s653 = sand.u32 1, 7
          %s654 = ssub.s32 1, %s653
          %s655 = scalar_lea.vmem %s626, %s654
          %s656 = ssub.s32 1, %s653
          %s657 = scalar_lea.vmem %s627, %s656 [#allocation2]
          %s658 = sshllo.u32 0, %s653
          loop: start=0, step=1, limit=1
          $region425: #{tpu_custom_call.1} parent=423 // loop_pre_header
            _
          $region426: #{tpu_custom_call.1} parent=423 // loop_header
            %s660 = sphi 0, %s664
            %p661 = scmp.ge.s32.totalorder %s660, 1
            %s665 = sphi %s655, %s655
            %s666 = sphi %s657, %s657
          $region427: #{tpu_custom_call.1} parent=423 // loop_header_branch
            %663 = sbr.rel (%p661) target = $region431
          $region428: #{tpu_custom_call.1} parent=423 // loop_body
            %v667 = vld [vmem:[%s665] sm:%s658]
            %668 = vst [vmem:[%s666] sm:%s658] %v667
          $region429: #{tpu_custom_call.1} parent=423 // loop_footer
            %s664 = sadd.s32 1, %s660
          $region430: #{tpu_custom_call.1} parent=423 // loop_footer_branch
            %659 = sbr.rel target = $region426
          $region431: #{tpu_custom_call.1} parent=423 // loop_exit
            _
        $region424: #{tpu_custom_call.1} parent=408 // pred_fallthru
          _
      $region409: #{tpu_custom_call.1} parent=44 // pred_fallthru
        _
      // Predicated region
      $region410: #{tpu_custom_call.1} parent=44 // pred_check
        %p634 = pneg %p630
      $region411: #{tpu_custom_call.1} parent=44 // pred_check_branch
        %636 = sbr.rel (%p634) target = $region413
      $region412: #{tpu_custom_call.1} parent=44 // pred_region
        %s637 = sshllo.u32 0, 1
        loop: start=0, step=1, limit=1
        $region414: #{tpu_custom_call.1} parent=412 // loop_pre_header
          _
        $region415: #{tpu_custom_call.1} parent=412 // loop_header
          %s639 = sphi 0, %s643
          %p640 = scmp.ge.s32.totalorder %s639, 1
          %s644 = sphi %s626, %s626
          %s645 = sphi %s627, %s627
        $region416: #{tpu_custom_call.1} parent=412 // loop_header_branch
          %642 = sbr.rel (%p640) target = $region420
        $region417: #{tpu_custom_call.1} parent=412 // loop_body
          %v646 = vld [vmem:[%s644] sm:%s637]
          %647 = vst [vmem:[%s645] sm:%s637] %v646
        $region418: #{tpu_custom_call.1} parent=412 // loop_footer
          %s643 = sadd.s32 1, %s639
        $region419: #{tpu_custom_call.1} parent=412 // loop_footer_branch
          %638 = sbr.rel target = $region415
        $region420: #{tpu_custom_call.1} parent=412 // loop_exit
          _
      $region413: #{tpu_custom_call.1} parent=44 // pred_fallthru
        _
      // Predicated region
      $region432: #{tpu_custom_call.1} parent=44 // pred_check
        _
      $region433: #{tpu_custom_call.1} parent=44 // pred_check_branch
        %671 = sbr.rel (0) target = $region435
      $region434: #{tpu_custom_call.1} parent=44 // pred_region
        %672 = vsyncadd %s628, 16
      $region435: #{tpu_custom_call.1} parent=44 // pred_fallthru
        _
      %s673 = sld [smem:[#allocation5 + $0xd]]
      %s674 = scalar_lea.vmem %s1, %s673
      %s675 = scalar_lea.vmem [#allocation2], 13
      %s676 = scalar_lea.sflag [#allocation3], 13
      %p678 = scmp.lt.u32.totalorder 1, 8
      %p679 = pneg %p678
      // Predicated region
      $region436: #{tpu_custom_call.1} parent=44 // pred_check
        _
      $region437: #{tpu_custom_call.1} parent=44 // pred_check_branch
        %681 = sbr.rel (%p678) target = $region439
      $region438: #{tpu_custom_call.1} parent=44 // pred_region
        %s696 = sand.u32 1, 7
        %p697 = scmp.eq.s32.totalorder %s696, 0
        %p698 = pneg %p697
        // Predicated region
        $region451: #{tpu_custom_call.1} parent=438 // pred_check
          _
        $region452: #{tpu_custom_call.1} parent=438 // pred_check_branch
          %700 = sbr.rel (%p697) target = $region454
        $region453: #{tpu_custom_call.1} parent=438 // pred_region
          %s701 = sand.u32 1, 7
          %s702 = ssub.s32 1, %s701
          %s703 = scalar_lea.vmem %s674, %s702
          %s704 = ssub.s32 1, %s701
          %s705 = scalar_lea.vmem %s675, %s704 [#allocation2]
          %s706 = sshllo.u32 0, %s701
          loop: start=0, step=1, limit=1
          $region455: #{tpu_custom_call.1} parent=453 // loop_pre_header
            _
          $region456: #{tpu_custom_call.1} parent=453 // loop_header
            %s708 = sphi 0, %s712
            %p709 = scmp.ge.s32.totalorder %s708, 1
            %s713 = sphi %s703, %s703
            %s714 = sphi %s705, %s705
          $region457: #{tpu_custom_call.1} parent=453 // loop_header_branch
            %711 = sbr.rel (%p709) target = $region461
          $region458: #{tpu_custom_call.1} parent=453 // loop_body
            %v715 = vld [vmem:[%s713] sm:%s706]
            %716 = vst [vmem:[%s714] sm:%s706] %v715
          $region459: #{tpu_custom_call.1} parent=453 // loop_footer
            %s712 = sadd.s32 1, %s708
          $region460: #{tpu_custom_call.1} parent=453 // loop_footer_branch
            %707 = sbr.rel target = $region456
          $region461: #{tpu_custom_call.1} parent=453 // loop_exit
            _
        $region454: #{tpu_custom_call.1} parent=438 // pred_fallthru
          _
      $region439: #{tpu_custom_call.1} parent=44 // pred_fallthru
        _
      // Predicated region
      $region440: #{tpu_custom_call.1} parent=44 // pred_check
        %p682 = pneg %p678
      $region441: #{tpu_custom_call.1} parent=44 // pred_check_branch
        %684 = sbr.rel (%p682) target = $region443
      $region442: #{tpu_custom_call.1} parent=44 // pred_region
        %s685 = sshllo.u32 0, 1
        loop: start=0, step=1, limit=1
        $region444: #{tpu_custom_call.1} parent=442 // loop_pre_header
          _
        $region445: #{tpu_custom_call.1} parent=442 // loop_header
          %s687 = sphi 0, %s691
          %p688 = scmp.ge.s32.totalorder %s687, 1
          %s692 = sphi %s674, %s674
          %s693 = sphi %s675, %s675
        $region446: #{tpu_custom_call.1} parent=442 // loop_header_branch
          %690 = sbr.rel (%p688) target = $region450
        $region447: #{tpu_custom_call.1} parent=442 // loop_body
          %v694 = vld [vmem:[%s692] sm:%s685]
          %695 = vst [vmem:[%s693] sm:%s685] %v694
        $region448: #{tpu_custom_call.1} parent=442 // loop_footer
          %s691 = sadd.s32 1, %s687
        $region449: #{tpu_custom_call.1} parent=442 // loop_footer_branch
          %686 = sbr.rel target = $region445
        $region450: #{tpu_custom_call.1} parent=442 // loop_exit
          _
      $region443: #{tpu_custom_call.1} parent=44 // pred_fallthru
        _
      // Predicated region
      $region462: #{tpu_custom_call.1} parent=44 // pred_check
        _
      $region463: #{tpu_custom_call.1} parent=44 // pred_check_branch
        %719 = sbr.rel (0) target = $region465
      $region464: #{tpu_custom_call.1} parent=44 // pred_region
        %720 = vsyncadd %s676, 16
      $region465: #{tpu_custom_call.1} parent=44 // pred_fallthru
        _
      %s721 = sld [smem:[#allocation5 + $0xe]]
      %s722 = scalar_lea.vmem %s1, %s721
      %s723 = scalar_lea.vmem [#allocation2], 14
      %s724 = scalar_lea.sflag [#allocation3], 14
      %p726 = scmp.lt.u32.totalorder 1, 8
      %p727 = pneg %p726
      // Predicated region
      $region466: #{tpu_custom_call.1} parent=44 // pred_check
        _
      $region467: #{tpu_custom_call.1} parent=44 // pred_check_branch
        %729 = sbr.rel (%p726) target = $region469
      $region468: #{tpu_custom_call.1} parent=44 // pred_region
        %s744 = sand.u32 1, 7
        %p745 = scmp.eq.s32.totalorder %s744, 0
        %p746 = pneg %p745
        // Predicated region
        $region481: #{tpu_custom_call.1} parent=468 // pred_check
          _
        $region482: #{tpu_custom_call.1} parent=468 // pred_check_branch
          %748 = sbr.rel (%p745) target = $region484
        $region483: #{tpu_custom_call.1} parent=468 // pred_region
          %s749 = sand.u32 1, 7
          %s750 = ssub.s32 1, %s749
          %s751 = scalar_lea.vmem %s722, %s750
          %s752 = ssub.s32 1, %s749
          %s753 = scalar_lea.vmem %s723, %s752 [#allocation2]
          %s754 = sshllo.u32 0, %s749
          loop: start=0, step=1, limit=1
          $region485: #{tpu_custom_call.1} parent=483 // loop_pre_header
            _
          $region486: #{tpu_custom_call.1} parent=483 // loop_header
            %s756 = sphi 0, %s760
            %p757 = scmp.ge.s32.totalorder %s756, 1
            %s761 = sphi %s751, %s751
            %s762 = sphi %s753, %s753
          $region487: #{tpu_custom_call.1} parent=483 // loop_header_branch
            %759 = sbr.rel (%p757) target = $region491
          $region488: #{tpu_custom_call.1} parent=483 // loop_body
            %v763 = vld [vmem:[%s761] sm:%s754]
            %764 = vst [vmem:[%s762] sm:%s754] %v763
          $region489: #{tpu_custom_call.1} parent=483 // loop_footer
            %s760 = sadd.s32 1, %s756
          $region490: #{tpu_custom_call.1} parent=483 // loop_footer_branch
            %755 = sbr.rel target = $region486
          $region491: #{tpu_custom_call.1} parent=483 // loop_exit
            _
        $region484: #{tpu_custom_call.1} parent=468 // pred_fallthru
          _
      $region469: #{tpu_custom_call.1} parent=44 // pred_fallthru
        _
      // Predicated region
      $region470: #{tpu_custom_call.1} parent=44 // pred_check
        %p730 = pneg %p726
      $region471: #{tpu_custom_call.1} parent=44 // pred_check_branch
        %732 = sbr.rel (%p730) target = $region473
      $region472: #{tpu_custom_call.1} parent=44 // pred_region
        %s733 = sshllo.u32 0, 1
        loop: start=0, step=1, limit=1
        $region474: #{tpu_custom_call.1} parent=472 // loop_pre_header
          _
        $region475: #{tpu_custom_call.1} parent=472 // loop_header
          %s735 = sphi 0, %s739
          %p736 = scmp.ge.s32.totalorder %s735, 1
          %s740 = sphi %s722, %s722
          %s741 = sphi %s723, %s723
        $region476: #{tpu_custom_call.1} parent=472 // loop_header_branch
          %738 = sbr.rel (%p736) target = $region480
        $region477: #{tpu_custom_call.1} parent=472 // loop_body
          %v742 = vld [vmem:[%s740] sm:%s733]
          %743 = vst [vmem:[%s741] sm:%s733] %v742
        $region478: #{tpu_custom_call.1} parent=472 // loop_footer
          %s739 = sadd.s32 1, %s735
        $region479: #{tpu_custom_call.1} parent=472 // loop_footer_branch
          %734 = sbr.rel target = $region475
        $region480: #{tpu_custom_call.1} parent=472 // loop_exit
          _
      $region473: #{tpu_custom_call.1} parent=44 // pred_fallthru
        _
      // Predicated region
      $region492: #{tpu_custom_call.1} parent=44 // pred_check
        _
      $region493: #{tpu_custom_call.1} parent=44 // pred_check_branch
        %767 = sbr.rel (0) target = $region495
      $region494: #{tpu_custom_call.1} parent=44 // pred_region
        %768 = vsyncadd %s724, 16
      $region495: #{tpu_custom_call.1} parent=44 // pred_fallthru
        _
      %s769 = sld [smem:[#allocation5 + $0xf]]
      %s770 = scalar_lea.vmem %s1, %s769
      %s771 = scalar_lea.vmem [#allocation2], 15
      %s772 = scalar_lea.sflag [#allocation3], 15
      %p774 = scmp.lt.u32.totalorder 1, 8
      %p775 = pneg %p774
      // Predicated region
      $region496: #{tpu_custom_call.1} parent=44 // pred_check
        _
      $region497: #{tpu_custom_call.1} parent=44 // pred_check_branch
        %777 = sbr.rel (%p774) target = $region499
      $region498: #{tpu_custom_call.1} parent=44 // pred_region
        %s792 = sand.u32 1, 7
        %p793 = scmp.eq.s32.totalorder %s792, 0
        %p794 = pneg %p793
        // Predicated region
        $region511: #{tpu_custom_call.1} parent=498 // pred_check
          _
        $region512: #{tpu_custom_call.1} parent=498 // pred_check_branch
          %796 = sbr.rel (%p793) target = $region514
        $region513: #{tpu_custom_call.1} parent=498 // pred_region
          %s797 = sand.u32 1, 7
          %s798 = ssub.s32 1, %s797
          %s799 = scalar_lea.vmem %s770, %s798
          %s800 = ssub.s32 1, %s797
          %s801 = scalar_lea.vmem %s771, %s800 [#allocation2]
          %s802 = sshllo.u32 0, %s797
          loop: start=0, step=1, limit=1
          $region515: #{tpu_custom_call.1} parent=513 // loop_pre_header
            _
          $region516: #{tpu_custom_call.1} parent=513 // loop_header
            %s804 = sphi 0, %s808
            %p805 = scmp.ge.s32.totalorder %s804, 1
            %s809 = sphi %s799, %s799
            %s810 = sphi %s801, %s801
          $region517: #{tpu_custom_call.1} parent=513 // loop_header_branch
            %807 = sbr.rel (%p805) target = $region521
          $region518: #{tpu_custom_call.1} parent=513 // loop_body
            %v811 = vld [vmem:[%s809] sm:%s802]
            %812 = vst [vmem:[%s810] sm:%s802] %v811
          $region519: #{tpu_custom_call.1} parent=513 // loop_footer
            %s808 = sadd.s32 1, %s804
          $region520: #{tpu_custom_call.1} parent=513 // loop_footer_branch
            %803 = sbr.rel target = $region516
          $region521: #{tpu_custom_call.1} parent=513 // loop_exit
            _
        $region514: #{tpu_custom_call.1} parent=498 // pred_fallthru
          _
      $region499: #{tpu_custom_call.1} parent=44 // pred_fallthru
        _
      // Predicated region
      $region500: #{tpu_custom_call.1} parent=44 // pred_check
        %p778 = pneg %p774
      $region501: #{tpu_custom_call.1} parent=44 // pred_check_branch
        %780 = sbr.rel (%p778) target = $region503
      $region502: #{tpu_custom_call.1} parent=44 // pred_region
        %s781 = sshllo.u32 0, 1
        loop: start=0, step=1, limit=1
        $region504: #{tpu_custom_call.1} parent=502 // loop_pre_header
          _
        $region505: #{tpu_custom_call.1} parent=502 // loop_header
          %s783 = sphi 0, %s787
          %p784 = scmp.ge.s32.totalorder %s783, 1
          %s788 = sphi %s770, %s770
          %s789 = sphi %s771, %s771
        $region506: #{tpu_custom_call.1} parent=502 // loop_header_branch
          %786 = sbr.rel (%p784) target = $region510
        $region507: #{tpu_custom_call.1} parent=502 // loop_body
          %v790 = vld [vmem:[%s788] sm:%s781]
          %791 = vst [vmem:[%s789] sm:%s781] %v790
        $region508: #{tpu_custom_call.1} parent=502 // loop_footer
          %s787 = sadd.s32 1, %s783
        $region509: #{tpu_custom_call.1} parent=502 // loop_footer_branch
          %782 = sbr.rel target = $region505
        $region510: #{tpu_custom_call.1} parent=502 // loop_exit
          _
      $region503: #{tpu_custom_call.1} parent=44 // pred_fallthru
        _
      // Predicated region
      $region522: #{tpu_custom_call.1} parent=44 // pred_check
        _
      $region523: #{tpu_custom_call.1} parent=44 // pred_check_branch
        %815 = sbr.rel (0) target = $region525
      $region524: #{tpu_custom_call.1} parent=44 // pred_region
        %816 = vsyncadd %s772, 16
      $region525: #{tpu_custom_call.1} parent=44 // pred_fallthru
        _
      %s817 = smul.u32 1, 1
      %s818 = sshll.u32 %s817, 4
      %819 = dma.done [#allocation3], %s818
      %s820 = sshll.u32 %s817, 4
      %821 = dma.done %s100, %s820
      %s822 = sshll.u32 %s817, 4
      %823 = dma.done %s148, %s822
      %s824 = sshll.u32 %s817, 4
      %825 = dma.done %s196, %s824
      %s826 = sshll.u32 %s817, 4
      %827 = dma.done %s244, %s826
      %s828 = sshll.u32 %s817, 4
      %829 = dma.done %s292, %s828
      %s830 = sshll.u32 %s817, 4
      %831 = dma.done %s340, %s830
      %s832 = sshll.u32 %s817, 4
      %833 = dma.done %s388, %s832
      %s834 = sshll.u32 %s817, 4
      %835 = dma.done %s436, %s834
      %s836 = sshll.u32 %s817, 4
      %837 = dma.done %s484, %s836
      %s838 = sshll.u32 %s817, 4
      %839 = dma.done %s532, %s838
      %s840 = sshll.u32 %s817, 4
      %841 = dma.done %s580, %s840
      %s842 = sshll.u32 %s817, 4
      %843 = dma.done %s628, %s842
      %s844 = sshll.u32 %s817, 4
      %845 = dma.done %s676, %s844
      %s846 = sshll.u32 %s817, 4
      %847 = dma.done %s724, %s846
      %s848 = sshll.u32 %s817, 4
      %849 = dma.done %s772, %s848
      %v850 = vld [vmem:[#allocation2] sm:$0xff]
      %v851 = vld [vmem:[#allocation2 + $0x8] sm:$0xff]
      %v852 = vpack.c.bf16 %v851, %v850
      %v853 = vld [vmem:[%s2] sm:$0xff]
      %v854 = vld [vmem:[%s2 + $0x8] sm:$0xff]
      %v855 = vpack.c.bf16 %v854, %v853
      %v856 = vld [vmem:[%s4] sm:$0xf]
      %v857 = vld [vmem:[%s4 + $0x4] sm:$0xf]
      %v858 = vld [vmem:[%s4 + $0x8] sm:$0xf]
      %v859 = vld [vmem:[%s4 + $0xc] sm:$0xf]
      %v860 = vld [vmem:[%s5] sm:$0x1]
      %v862 = vlaneseq
      %v863 = vshrl.u32 %v862, 7
      %v864 = vsub.s32 0, %v863
      %v865 = vrot.slane %v860, %v864
      %v871 = vunpack.c.l.b16 %v856
      %v872 = vunpack.c.l.b16 %v857
      %v873 = vunpack.c.l.b16 %v858
      %v874 = vunpack.c.l.b16 %v859
      %v875 = vpack.c.b16 %v872, %v871
      %v876 = vpack.c.b16 %v874, %v873
      %vm879 = vcmask 261120
      %v881 = vsel %vm879, %v852, 0
      %883 = vmatprep.subr.bf16.mxu0 0
      %884 = vmatpush1.bf16.msra.mxu0 %v875
      %885 = vmatprep.subr.bf16.mxu0 0
      %886 = vmatpush1.bf16.msra.mxu0 %v876
      %887 = vmatprep.subr.bf16.mxu0 0
      %888 = vmatpush1.bf16.msra.mxu0 0
      %889 = vmatprep.subr.bf16.mxu0 0
      %890 = vmatpush1.bf16.msra.mxu0 0
      %891 = vmatprep.subr.bf16.mxu0 0
      %892 = vmatpush1.bf16.msra.mxu0 0
      %893 = vmatprep.subr.bf16.mxu0 0
      %894 = vmatpush1.bf16.msra.mxu0 0
      %895 = vmatprep.subr.bf16.mxu0 0
      %896 = vmatpush1.bf16.msra.mxu0 0
      %897 = vmatprep.subr.bf16.mxu0 0
      %898 = vmatpush1.bf16.msra.mxu0 0
      %899 = vmatprep.subr.bf16.mxu0 0
      %900 = vmatpush1.bf16.msra.mxu0 0
      %901 = vmatprep.subr.bf16.mxu0 0
      %902 = vmatpush1.bf16.msra.mxu0 0
      %903 = vmatprep.subr.bf16.mxu0 0
      %904 = vmatpush1.bf16.msra.mxu0 0
      %905 = vmatprep.subr.bf16.mxu0 0
      %906 = vmatpush1.bf16.msra.mxu0 0
      %907 = vmatprep.subr.bf16.mxu0 0
      %908 = vmatpush1.bf16.msra.mxu0 0
      %909 = vmatprep.subr.bf16.mxu0 0
      %910 = vmatpush1.bf16.msra.mxu0 0
      %911 = vmatprep.subr.bf16.mxu0 0
      %912 = vmatpush1.bf16.msra.mxu0 0
      %913 = vmatprep.subr.bf16.mxu0 0
      %914 = vmatpush1.bf16.msra.mxu0 0
      %915 = vmatprep.mubr.bf16.mxu0 0
      %916 = vmatmul.mubr.bf16.gmra.mrb[0].mxu0 %v881
      %v917 = vpop.f32.mrb[0].mxu0
      %v918 = vadd.f32 %v865, %v917
      %v919 = vpop.f32.mrb[0].mxu0
      %v920 = vpop.f32.mrb[0].mxu0
      %v921 = vadd.f32 %v865, %v920
      %v922 = vpop.f32.mrb[0].mxu0
      %923 = vdwg.mxu0
      %v924 = vld [vmem:[%s6] sm:$0xf]
      %v925 = vld [vmem:[%s6 + $0x4] sm:$0xf]
      %v926 = vld [vmem:[%s6 + $0x8] sm:$0xf]
      %v927 = vld [vmem:[%s6 + $0xc] sm:$0xf]
      %v928 = vld [vmem:[%s7] sm:$0x1]
      %v930 = vlaneseq
      %v931 = vshrl.u32 %v930, 7
      %v932 = vsub.s32 0, %v931
      %v933 = vrot.slane %v928, %v932
      %v939 = vunpack.c.l.b16 %v924
      %v940 = vunpack.c.l.b16 %v925
      %v941 = vunpack.c.l.b16 %v926
      %v942 = vunpack.c.l.b16 %v927
      %v943 = vpack.c.b16 %v940, %v939
      %v944 = vpack.c.b16 %v942, %v941
      %v948 = vsel %vm879, %v855, 0
      %950 = vmatprep.subr.bf16.mxu0 0
      %951 = vmatpush1.bf16.msra.mxu0 %v943
      %952 = vmatprep.subr.bf16.mxu0 0
      %953 = vmatpush1.bf16.msra.mxu0 %v944
      %954 = vmatprep.subr.bf16.mxu0 0
      %955 = vmatpush1.bf16.msra.mxu0 0
      %956 = vmatprep.subr.bf16.mxu0 0
      %957 = vmatpush1.bf16.msra.mxu0 0
      %958 = vmatprep.subr.bf16.mxu0 0
      %959 = vmatpush1.bf16.msra.mxu0 0
      %960 = vmatprep.subr.bf16.mxu0 0
      %961 = vmatpush1.bf16.msra.mxu0 0
      %962 = vmatprep.subr.bf16.mxu0 0
      %963 = vmatpush1.bf16.msra.mxu0 0
      %964 = vmatprep.subr.bf16.mxu0 0
      %965 = vmatpush1.bf16.msra.mxu0 0
      %966 = vmatprep.subr.bf16.mxu0 0
      %967 = vmatpush1.bf16.msra.mxu0 0
      %968 = vmatprep.subr.bf16.mxu0 0
      %969 = vmatpush1.bf16.msra.mxu0 0
      %970 = vmatprep.subr.bf16.mxu0 0
      %971 = vmatpush1.bf16.msra.mxu0 0
      %972 = vmatprep.subr.bf16.mxu0 0
      %973 = vmatpush1.bf16.msra.mxu0 0
      %974 = vmatprep.subr.bf16.mxu0 0
      %975 = vmatpush1.bf16.msra.mxu0 0
      %976 = vmatprep.subr.bf16.mxu0 0
      %977 = vmatpush1.bf16.msra.mxu0 0
      %978 = vmatprep.subr.bf16.mxu0 0
      %979 = vmatpush1.bf16.msra.mxu0 0
      %980 = vmatprep.subr.bf16.mxu0 0
      %981 = vmatpush1.bf16.msra.mxu0 0
      %982 = vmatprep.mubr.bf16.mxu0 0
      %983 = vmatmul.mubr.bf16.gmra.mrb[0].mxu0 %v948
      %v984 = vpop.f32.mrb[0].mxu0
      %v985 = vadd.f32 %v933, %v984
      %v986 = vpop.f32.mrb[0].mxu0
      %v987 = vpop.f32.mrb[0].mxu0
      %v988 = vadd.f32 %v933, %v987
      %v989 = vpop.f32.mrb[0].mxu0
      %990 = vdwg.mxu0
      %v991 = vld [vmem:[%s8] sm:$0xf]
      %v992 = vld [vmem:[%s8 + $0x4] sm:$0xf]
      %v993 = vld [vmem:[%s8 + $0x8] sm:$0xf]
      %v994 = vld [vmem:[%s8 + $0xc] sm:$0xf]
      %v995 = vld [vmem:[%s9] sm:$0x1]
      %v997 = vlaneseq
      %v998 = vshrl.u32 %v997, 7
      %v999 = vsub.s32 0, %v998
      %v1000 = vrot.slane %v995, %v999
      %v1006 = vunpack.c.l.b16 %v991
      %v1007 = vunpack.c.l.b16 %v992
      %v1008 = vunpack.c.l.b16 %v993
      %v1009 = vunpack.c.l.b16 %v994
      %v1010 = vpack.c.b16 %v1007, %v1006
      %v1011 = vpack.c.b16 %v1009, %v1008
      %1014 = vmatprep.subr.bf16.mxu0 0
      %1015 = vmatpush1.bf16.msra.mxu0 %v1010
      %1016 = vmatprep.subr.bf16.mxu0 0
      %1017 = vmatpush1.bf16.msra.mxu0 %v1011
      %1018 = vmatprep.subr.bf16.mxu0 0
      %1019 = vmatpush1.bf16.msra.mxu0 0
      %1020 = vmatprep.subr.bf16.mxu0 0
      %1021 = vmatpush1.bf16.msra.mxu0 0
      %1022 = vmatprep.subr.bf16.mxu0 0
      %1023 = vmatpush1.bf16.msra.mxu0 0
      %1024 = vmatprep.subr.bf16.mxu0 0
      %1025 = vmatpush1.bf16.msra.mxu0 0
      %1026 = vmatprep.subr.bf16.mxu0 0
      %1027 = vmatpush1.bf16.msra.mxu0 0
      %1028 = vmatprep.subr.bf16.mxu0 0
      %1029 = vmatpush1.bf16.msra.mxu0 0
      %1030 = vmatprep.subr.bf16.mxu0 0
      %1031 = vmatpush1.bf16.msra.mxu0 0
      %1032 = vmatprep.subr.bf16.mxu0 0
      %1033 = vmatpush1.bf16.msra.mxu0 0
      %1034 = vmatprep.subr.bf16.mxu0 0
      %1035 = vmatpush1.bf16.msra.mxu0 0
      %1036 = vmatprep.subr.bf16.mxu0 0
      %1037 = vmatpush1.bf16.msra.mxu0 0
      %1038 = vmatprep.subr.bf16.mxu0 0
      %1039 = vmatpush1.bf16.msra.mxu0 0
      %1040 = vmatprep.subr.bf16.mxu0 0
      %1041 = vmatpush1.bf16.msra.mxu0 0
      %1042 = vmatprep.subr.bf16.mxu0 0
      %1043 = vmatpush1.bf16.msra.mxu0 0
      %1044 = vmatprep.subr.bf16.mxu0 0
      %1045 = vmatpush1.bf16.msra.mxu0 0
      %1046 = vmatprep.mubr.bf16.mxu0 0
      %1047 = vmatmul.mubr.bf16.gmra.mrb[0].mxu0 %v948
      %v1048 = vpop.f32.mrb[0].mxu0
      %v1049 = vadd.f32 %v1000, %v1048
      %v1050 = vpop.f32.mrb[0].mxu0
      %v1051 = vpop.f32.mrb[0].mxu0
      %v1052 = vadd.f32 %v1000, %v1051
      %v1053 = vpop.f32.mrb[0].mxu0
      %1054 = vdwg.mxu0
      %v1055 = vpack.c.bf16 %v921, %v918
      %v1056 = vpack.c.bf16 %v988, %v985
      %v1057 = vpack.c.bf16 %v1052, %v1049
      %v1058 = vld [vmem:[%s3] sm:$0x3]
      %v1059 = vld [vmem:[%s3 + $0x2] sm:$0x3]
      %vm1060 = vnez %v1058
      %vm1061 = vnez %v1059
      %v1063 = vsel %vm879, %v1055, 0
      %v1066 = vsel %vm879, %v1056, 0
      %1068 = vmatprep.subr.bf16.mxu0 0
      %1069 = vmatpush1.bf16.xpose.msra.mxu0 %v1066
      %1070 = vmatprep.subr.bf16.mxu0 0
      %1071 = vmatpush1.bf16.xpose.msra.mxu0 0
      %1072 = vmatprep.subr.bf16.mxu0 0
      %1073 = vmatpush1.bf16.xpose.msra.mxu0 0
      %1074 = vmatprep.subr.bf16.mxu0 0
      %1075 = vmatpush1.bf16.xpose.msra.mxu0 0
      %1076 = vmatprep.subr.bf16.mxu0 0
      %1077 = vmatpush1.bf16.xpose.msra.mxu0 0
      %1078 = vmatprep.subr.bf16.mxu0 0
      %1079 = vmatpush1.bf16.xpose.msra.mxu0 0
      %1080 = vmatprep.subr.bf16.mxu0 0
      %1081 = vmatpush1.bf16.xpose.msra.mxu0 0
      %1082 = vmatprep.subr.bf16.mxu0 0
      %1083 = vmatpush1.bf16.xpose.msra.mxu0 0
      %1084 = vmatprep.subr.bf16.mxu0 0
      %1085 = vmatpush1.bf16.xpose.msra.mxu0 0
      %1086 = vmatprep.subr.bf16.mxu0 0
      %1087 = vmatpush1.bf16.xpose.msra.mxu0 0
      %1088 = vmatprep.subr.bf16.mxu0 0
      %1089 = vmatpush1.bf16.xpose.msra.mxu0 0
      %1090 = vmatprep.subr.bf16.mxu0 0
      %1091 = vmatpush1.bf16.xpose.msra.mxu0 0
      %1092 = vmatprep.subr.bf16.mxu0 0
      %1093 = vmatpush1.bf16.xpose.msra.mxu0 0
      %1094 = vmatprep.subr.bf16.mxu0 0
      %1095 = vmatpush1.bf16.xpose.msra.mxu0 0
      %1096 = vmatprep.subr.bf16.mxu0 0
      %1097 = vmatpush1.bf16.xpose.msra.mxu0 0
      %1098 = vmatprep.subr.bf16.mxu0 0
      %1099 = vmatpush1.bf16.xpose.msra.mxu0 0
      %1100 = vmatprep.mubr.bf16.mxu0 0
      %1101 = vmatmul.mubr.bf16.gmra.mrb[0].mxu0 %v1063
      %v1102 = vpop.f32.mrb[0].mxu0
      %v1103 = vadd.f32 0.0, %v1102
      %v1104 = vpop.f32.mrb[0].mxu0
      %v1105 = vpop.f32.mrb[0].mxu0
      %v1106 = vpop.f32.mrb[0].mxu0
      %1107 = vdwg.mxu0
      %v1108 = vmul.f32 %v1103, 0.17677669
      %v1109 = vsel %vm1060, 16843009, 0
      %v1110 = vunpack.c.0.s8 %v1109
      %vm1111 = vcmp.ne.s32.totalorder %v1110, 0
      %v1112 = vsel %vm1111, %v1108, -1e+30
      %vm1113 = vcmask 64512
      %v1114 = vsel %vm1113, %v1112, -inf
      %1115 = vmax.xlane.f32.xlu0 %v1114
      %v1116 = vpop.xlane.xlu0 %1115
      %v1117 = vsub.f32 %v1112, %v1116
      %v1118 = vmul.f32 %v1117, 1.442695
      %v1119 = vpow.pop %v1118
      %v1120 = vsel %vm1113, %v1119, 0.0
      %1121 = vadd.xlane.f32.xlu0 %v1120
      %v1122 = vpop.xlane.xlu0 %1121
      %v1123 = vrcp.pop %v1122
      %v1124 = vmul.f32 %v1119, %v1123
      %v1125 = vpack.c.bf16 %v1124, %v1124
      %v1127 = vsel %vm1113, %v1125, 0
      %vm1129 = vcmask 1043456
      %v1131 = vsel %vm1129, %v1057, 0
      %1133 = vmatprep.subr.bf16.mxu0 0
      %1134 = vmatpush1.bf16.msra.mxu0 %v1131
      %1135 = vmatprep.subr.bf16.mxu0 0
      %1136 = vmatpush1.bf16.msra.mxu0 0
      %1137 = vmatprep.subr.bf16.mxu0 0
      %1138 = vmatpush1.bf16.msra.mxu0 0
      %1139 = vmatprep.subr.bf16.mxu0 0
      %1140 = vmatpush1.bf16.msra.mxu0 0
      %1141 = vmatprep.subr.bf16.mxu0 0
      %1142 = vmatpush1.bf16.msra.mxu0 0
      %1143 = vmatprep.subr.bf16.mxu0 0
      %1144 = vmatpush1.bf16.msra.mxu0 0
      %1145 = vmatprep.subr.bf16.mxu0 0
      %1146 = vmatpush1.bf16.msra.mxu0 0
      %1147 = vmatprep.subr.bf16.mxu0 0
      %1148 = vmatpush1.bf16.msra.mxu0 0
      %1149 = vmatprep.subr.bf16.mxu0 0
      %1150 = vmatpush1.bf16.msra.mxu0 0
      %1151 = vmatprep.subr.bf16.mxu0 0
      %1152 = vmatpush1.bf16.msra.mxu0 0
      %1153 = vmatprep.subr.bf16.mxu0 0
      %1154 = vmatpush1.bf16.msra.mxu0 0
      %1155 = vmatprep.subr.bf16.mxu0 0
      %1156 = vmatpush1.bf16.msra.mxu0 0
      %1157 = vmatprep.subr.bf16.mxu0 0
      %1158 = vmatpush1.bf16.msra.mxu0 0
      %1159 = vmatprep.subr.bf16.mxu0 0
      %1160 = vmatpush1.bf16.msra.mxu0 0
      %1161 = vmatprep.subr.bf16.mxu0 0
      %1162 = vmatpush1.bf16.msra.mxu0 0
      %1163 = vmatprep.subr.bf16.mxu0 0
      %1164 = vmatpush1.bf16.msra.mxu0 0
      %1165 = vmatprep.mubr.bf16.mxu0 0
      %1166 = vmatmul.mubr.bf16.gmra.mrb[0].mxu0 %v1127
      %v1167 = vpop.f32.mrb[0].mxu0
      %v1168 = vadd.f32 0.0, %v1167
      %v1169 = vpop.f32.mrb[0].mxu0
      %v1170 = vpop.f32.mrb[0].mxu0
      %v1171 = vpop.f32.mrb[0].mxu0
      %1172 = vdwg.mxu0
      %v1173 = vadd.f32 %v850, %v1168
      %1174 = vst.msk [vmem:[#allocation2] sm:$0xff] %vm879, %v1173
      %v1176 = vrot.slane %v1055, 4
      %v1178 = vrot.slane %v1056, 4
      %v1180 = vsel %vm879, %v1176, 0
      %v1183 = vsel %vm879, %v1178, 0
      %1185 = vmatprep.subr.bf16.mxu0 0
      %1186 = vmatpush1.bf16.xpose.msra.mxu0 %v1183
      %1187 = vmatprep.subr.bf16.mxu0 0
      %1188 = vmatpush1.bf16.xpose.msra.mxu0 0
      %1189 = vmatprep.subr.bf16.mxu0 0
      %1190 = vmatpush1.bf16.xpose.msra.mxu0 0
      %1191 = vmatprep.subr.bf16.mxu0 0
      %1192 = vmatpush1.bf16.xpose.msra.mxu0 0
      %1193 = vmatprep.subr.bf16.mxu0 0
      %1194 = vmatpush1.bf16.xpose.msra.mxu0 0
      %1195 = vmatprep.subr.bf16.mxu0 0
      %1196 = vmatpush1.bf16.xpose.msra.mxu0 0
      %1197 = vmatprep.subr.bf16.mxu0 0
      %1198 = vmatpush1.bf16.xpose.msra.mxu0 0
      %1199 = vmatprep.subr.bf16.mxu0 0
      %1200 = vmatpush1.bf16.xpose.msra.mxu0 0
      %1201 = vmatprep.subr.bf16.mxu0 0
      %1202 = vmatpush1.bf16.xpose.msra.mxu0 0
      %1203 = vmatprep.subr.bf16.mxu0 0
      %1204 = vmatpush1.bf16.xpose.msra.mxu0 0
      %1205 = vmatprep.subr.bf16.mxu0 0
      %1206 = vmatpush1.bf16.xpose.msra.mxu0 0
      %1207 = vmatprep.subr.bf16.mxu0 0
      %1208 = vmatpush1.bf16.xpose.msra.mxu0 0
      %1209 = vmatprep.subr.bf16.mxu0 0
      %1210 = vmatpush1.bf16.xpose.msra.mxu0 0
      %1211 = vmatprep.subr.bf16.mxu0 0
      %1212 = vmatpush1.bf16.xpose.msra.mxu0 0
      %1213 = vmatprep.subr.bf16.mxu0 0
      %1214 = vmatpush1.bf16.xpose.msra.mxu0 0
      %1215 = vmatprep.subr.bf16.mxu0 0
      %1216 = vmatpush1.bf16.xpose.msra.mxu0 0
      %1217 = vmatprep.mubr.bf16.mxu0 0
      %1218 = vmatmul.mubr.bf16.gmra.mrb[0].mxu0 %v1180
      %v1219 = vpop.f32.mrb[0].mxu0
      %v1220 = vadd.f32 0.0, %v1219
      %v1221 = vpop.f32.mrb[0].mxu0
      %v1222 = vpop.f32.mrb[0].mxu0
      %v1223 = vpop.f32.mrb[0].mxu0
      %1224 = vdwg.mxu0
      %v1225 = vmul.f32 %v1220, 0.17677669
      %v1226 = vsel %vm1061, 16843009, 0
      %v1227 = vunpack.c.0.s8 %v1226
      %vm1228 = vcmp.ne.s32.totalorder %v1227, 0
      %v1229 = vsel %vm1228, %v1225, -1e+30
      %v1230 = vsel %vm1113, %v1229, -inf
      %1231 = vmax.xlane.f32.xlu0 %v1230
      %v1232 = vpop.xlane.xlu0 %1231
      %v1233 = vsub.f32 %v1229, %v1232
      %v1234 = vmul.f32 %v1233, 1.442695
      %v1235 = vpow.pop %v1234
      %v1236 = vsel %vm1113, %v1235, 0.0
      %1237 = vadd.xlane.f32.xlu0 %v1236
      %v1238 = vpop.xlane.xlu0 %1237
      %v1239 = vrcp.pop %v1238
      %v1240 = vmul.f32 %v1235, %v1239
      %v1241 = vpack.c.bf16 %v1240, %v1240
      %v1243 = vrot.slane %v1057, 4
      %v1245 = vsel %vm1113, %v1241, 0
      %v1248 = vsel %vm1129, %v1243, 0
      %1250 = vmatprep.subr.bf16.mxu0 0
      %1251 = vmatpush1.bf16.msra.mxu0 %v1248
      %1252 = vmatprep.subr.bf16.mxu0 0
      %1253 = vmatpush1.bf16.msra.mxu0 0
      %1254 = vmatprep.subr.bf16.mxu0 0
      %1255 = vmatpush1.bf16.msra.mxu0 0
      %1256 = vmatprep.subr.bf16.mxu0 0
      %1257 = vmatpush1.bf16.msra.mxu0 0
      %1258 = vmatprep.subr.bf16.mxu0 0
      %1259 = vmatpush1.bf16.msra.mxu0 0
      %1260 = vmatprep.subr.bf16.mxu0 0
      %1261 = vmatpush1.bf16.msra.mxu0 0
      %1262 = vmatprep.subr.bf16.mxu0 0
      %1263 = vmatpush1.bf16.msra.mxu0 0
      %1264 = vmatprep.subr.bf16.mxu0 0
      %1265 = vmatpush1.bf16.msra.mxu0 0
      %1266 = vmatprep.subr.bf16.mxu0 0
      %1267 = vmatpush1.bf16.msra.mxu0 0
      %1268 = vmatprep.subr.bf16.mxu0 0
      %1269 = vmatpush1.bf16.msra.mxu0 0
      %1270 = vmatprep.subr.bf16.mxu0 0
      %1271 = vmatpush1.bf16.msra.mxu0 0
      %1272 = vmatprep.subr.bf16.mxu0 0
      %1273 = vmatpush1.bf16.msra.mxu0 0
      %1274 = vmatprep.subr.bf16.mxu0 0
      %1275 = vmatpush1.bf16.msra.mxu0 0
      %1276 = vmatprep.subr.bf16.mxu0 0
      %1277 = vmatpush1.bf16.msra.mxu0 0
      %1278 = vmatprep.subr.bf16.mxu0 0
      %1279 = vmatpush1.bf16.msra.mxu0 0
      %1280 = vmatprep.subr.bf16.mxu0 0
      %1281 = vmatpush1.bf16.msra.mxu0 0
      %1282 = vmatprep.mubr.bf16.mxu0 0
      %1283 = vmatmul.mubr.bf16.gmra.mrb[0].mxu0 %v1245
      %v1284 = vpop.f32.mrb[0].mxu0
      %v1285 = vadd.f32 0.0, %v1284
      %v1286 = vpop.f32.mrb[0].mxu0
      %v1287 = vpop.f32.mrb[0].mxu0
      %v1288 = vpop.f32.mrb[0].mxu0
      %1289 = vdwg.mxu0
      %v1290 = vadd.f32 %v851, %v1285
      %1291 = vst.msk [vmem:[#allocation2 + $0x8] sm:$0xff] %vm879, %v1290
    $region45: #{tpu_custom_call.1} parent=1 // pred_fallthru
      _
    %v1292 = vld [vmem:[#allocation2] sm:$0xff]
    %v1293 = vld [vmem:[#allocation2 + $0x8] sm:$0xff]
    %v1294 = vpack.c.bf16 %v1293, %v1292
    %v1295 = vld [vmem:[%s10] sm:$0xf]
    %v1296 = vld [vmem:[%s10 + $0x4] sm:$0xf]
    %v1297 = vld [vmem:[%s10 + $0x8] sm:$0xf]
    %v1298 = vld [vmem:[%s10 + $0xc] sm:$0xf]
    %v1299 = vld [vmem:[%s11] sm:$0x1]
    %v1301 = vlaneseq
    %v1302 = vshrl.u32 %v1301, 7
    %v1303 = vsub.s32 0, %v1302
    %v1304 = vrot.slane %v1299, %v1303
    %v1310 = vunpack.c.l.b16 %v1295
    %v1311 = vunpack.c.l.b16 %v1296
    %v1312 = vunpack.c.l.b16 %v1297
    %v1313 = vunpack.c.l.b16 %v1298
    %v1314 = vpack.c.b16 %v1311, %v1310
    %v1315 = vpack.c.b16 %v1313, %v1312
    %vm1318 = vcmask 261120
    %v1320 = vsel %vm1318, %v1294, 0
    %1322 = vmatprep.subr.bf16.mxu0 0
    %1323 = vmatpush1.bf16.msra.mxu0 %v1314
    %1324 = vmatprep.subr.bf16.mxu0 0
    %1325 = vmatpush1.bf16.msra.mxu0 %v1315
    %1326 = vmatprep.subr.bf16.mxu0 0
    %1327 = vmatpush1.bf16.msra.mxu0 0
    %1328 = vmatprep.subr.bf16.mxu0 0
    %1329 = vmatpush1.bf16.msra.mxu0 0
    %1330 = vmatprep.subr.bf16.mxu0 0
    %1331 = vmatpush1.bf16.msra.mxu0 0
    %1332 = vmatprep.subr.bf16.mxu0 0
    %1333 = vmatpush1.bf16.msra.mxu0 0
    %1334 = vmatprep.subr.bf16.mxu0 0
    %1335 = vmatpush1.bf16.msra.mxu0 0
    %1336 = vmatprep.subr.bf16.mxu0 0
    %1337 = vmatpush1.bf16.msra.mxu0 0
    %1338 = vmatprep.subr.bf16.mxu0 0
    %1339 = vmatpush1.bf16.msra.mxu0 0
    %1340 = vmatprep.subr.bf16.mxu0 0
    %1341 = vmatpush1.bf16.msra.mxu0 0
    %1342 = vmatprep.subr.bf16.mxu0 0
    %1343 = vmatpush1.bf16.msra.mxu0 0
    %1344 = vmatprep.subr.bf16.mxu0 0
    %1345 = vmatpush1.bf16.msra.mxu0 0
    %1346 = vmatprep.subr.bf16.mxu0 0
    %1347 = vmatpush1.bf16.msra.mxu0 0
    %1348 = vmatprep.subr.bf16.mxu0 0
    %1349 = vmatpush1.bf16.msra.mxu0 0
    %1350 = vmatprep.subr.bf16.mxu0 0
    %1351 = vmatpush1.bf16.msra.mxu0 0
    %1352 = vmatprep.subr.bf16.mxu0 0
    %1353 = vmatpush1.bf16.msra.mxu0 0
    %1354 = vmatprep.mubr.bf16.mxu0 0
    %1355 = vmatmul.mubr.bf16.gmra.mrb[0].mxu0 %v1320
    %v1356 = vpop.f32.mrb[0].mxu0
    %v1357 = vadd.f32 %v1304, %v1356
    %v1358 = vpop.f32.mrb[0].mxu0
    %v1359 = vpop.f32.mrb[0].mxu0
    %v1360 = vadd.f32 %v1304, %v1359
    %v1361 = vpop.f32.mrb[0].mxu0
    %1362 = vdwg.mxu0
    %1363 = vst [vmem:[#allocation6] sm:$0xff] %v1357
    %1364 = vst [vmem:[#allocation6 + $0x8] sm:$0xff] %v1360
    // Predicated region
    $region526: #{tpu_custom_call.1} parent=1 // pred_check
      _
    $region527: #{tpu_custom_call.1} parent=1 // pred_check_branch
      %1366 = sbr.rel (0) target = $region529
    $region528: #{tpu_custom_call.1} parent=1 // pred_region
      %s1368 = ssub.s32 256, 256
      %1369 = vsyncadd [#allocation7], %s1368
      %s1370 = sshll.u32 [#allocation6], 4
      %s1371 = int_to_ptr.vmem [resolvable:$true] %s1370
      %1376 = dma.vmem_to_hbm [thread:$0]  %s1371, 256, %s12, [#allocation7], 128, 128, 8
    $region529: #{tpu_custom_call.1} parent=1 // pred_fallthru
      _
    // Predicated region
    $region530: #{tpu_custom_call.1} parent=1 // pred_check
      _
    $region531: #{tpu_custom_call.1} parent=1 // pred_check_branch
      %1378 = sbr.rel (0) target = $region533
    $region532: #{tpu_custom_call.1} parent=1 // pred_region
      %1379 = dma.done [#allocation7], 256
    $region533: #{tpu_custom_call.1} parent=1 // pred_fallthru
      _
    %1380 = vsyncpa [#allocation7], 1
  %1381 = vsyncmov [#allocation3]
  %s1382 = vpop.sfrf %1381
  %p1383 = scmp.eq.s32.totalorder %s1382, 0
  %p1384 = pneg %p1383
  %1386 = shalt.err (%p1384)
  %s1387 = scalar_lea.sflag [#allocation3], 1
  %1388 = vsyncmov %s1387
  %s1389 = vpop.sfrf %1388
  %p1390 = scmp.eq.s32.totalorder %s1389, 0
  %p1391 = pneg %p1390
  %1393 = shalt.err (%p1391)
  %s1394 = scalar_lea.sflag [#allocation3], 2
  %1395 = vsyncmov %s1394
  %s1396 = vpop.sfrf %1395
  %p1397 = scmp.eq.s32.totalorder %s1396, 0
  %p1398 = pneg %p1397
  %1400 = shalt.err (%p1398)
  %s1401 = scalar_lea.sflag [#allocation3], 3
  %1402 = vsyncmov %s1401
  %s1403 = vpop.sfrf %1402
  %p1404 = scmp.eq.s32.totalorder %s1403, 0
  %p1405 = pneg %p1404
  %1407 = shalt.err (%p1405)
  %s1408 = scalar_lea.sflag [#allocation3], 4
  %1409 = vsyncmov %s1408
  %s1410 = vpop.sfrf %1409
  %p1411 = scmp.eq.s32.totalorder %s1410, 0
  %p1412 = pneg %p1411
  %1414 = shalt.err (%p1412)
  %s1415 = scalar_lea.sflag [#allocation3], 5
  %1416 = vsyncmov %s1415
  %s1417 = vpop.sfrf %1416
  %p1418 = scmp.eq.s32.totalorder %s1417, 0
  %p1419 = pneg %p1418
  %1421 = shalt.err (%p1419)
  %s1422 = scalar_lea.sflag [#allocation3], 6
  %1423 = vsyncmov %s1422
  %s1424 = vpop.sfrf %1423
  %p1425 = scmp.eq.s32.totalorder %s1424, 0
  %p1426 = pneg %p1425
  %1428 = shalt.err (%p1426)
  %s1429 = scalar_lea.sflag [#allocation3], 7
  %1430 = vsyncmov %s1429
  %s1431 = vpop.sfrf %1430
  %p1432 = scmp.eq.s32.totalorder %s1431, 0
  %p1433 = pneg %p1432
  %1435 = shalt.err (%p1433)
  %s1436 = scalar_lea.sflag [#allocation3], 8
  %1437 = vsyncmov %s1436
  %s1438 = vpop.sfrf %1437
  %p1439 = scmp.eq.s32.totalorder %s1438, 0
  %p1440 = pneg %p1439
  %1442 = shalt.err (%p1440)
  %s1443 = scalar_lea.sflag [#allocation3], 9
  %1444 = vsyncmov %s1443
  %s1445 = vpop.sfrf %1444
  %p1446 = scmp.eq.s32.totalorder %s1445, 0
  %p1447 = pneg %p1446
  %1449 = shalt.err (%p1447)
  %s1450 = scalar_lea.sflag [#allocation3], 10
  %1451 = vsyncmov %s1450
  %s1452 = vpop.sfrf %1451
  %p1453 = scmp.eq.s32.totalorder %s1452, 0
  %p1454 = pneg %p1453
  %1456 = shalt.err (%p1454)
  %s1457 = scalar_lea.sflag [#allocation3], 11
  %1458 = vsyncmov %s1457
  %s1459 = vpop.sfrf %1458
  %p1460 = scmp.eq.s32.totalorder %s1459, 0
  %p1461 = pneg %p1460
  %1463 = shalt.err (%p1461)
  %s1464 = scalar_lea.sflag [#allocation3], 12
  %1465 = vsyncmov %s1464
  %s1466 = vpop.sfrf %1465
  %p1467 = scmp.eq.s32.totalorder %s1466, 0
  %p1468 = pneg %p1467
  %1470 = shalt.err (%p1468)
  %s1471 = scalar_lea.sflag [#allocation3], 13
  %1472 = vsyncmov %s1471
  %s1473 = vpop.sfrf %1472
  %p1474 = scmp.eq.s32.totalorder %s1473, 0
  %p1475 = pneg %p1474
  %1477 = shalt.err (%p1475)
  %s1478 = scalar_lea.sflag [#allocation3], 14
  %1479 = vsyncmov %s1478
  %s1480 = vpop.sfrf %1479
  %p1481 = scmp.eq.s32.totalorder %s1480, 0
  %p1482 = pneg %p1481
  %1484 = shalt.err (%p1482)
  %s1485 = scalar_lea.sflag [#allocation3], 15
  %1486 = vsyncmov %s1485
  %s1487 = vpop.sfrf %1486
  %p1488 = scmp.eq.s32.totalorder %s1487, 0
  %p1489 = pneg %p1488
  %1491 = shalt.err (%p1489)

</llo_original>
